<compile_context>
chip_gen: v7x
topology: tpu7x:2x2x1
jax: 0.10.0
libtpu: 0.0.40
codegen_flags: <defaults>
</compile_context>

<pallas_src>
import math

import jax
import jax.numpy as jnp
from jax.experimental import pallas as pl
from jax.experimental.pallas import tpu as pltpu

D_IN = 8            # SelfAtten.atten_input_dims (hard-coded in the module)
EMBED = 32          # config['atten_embed_dims'] == query/key/value dims (required by MHA)
HEADS = 4           # config['atten_heads']
HEAD_DIM = EMBED // HEADS
GROUP = 4           # batch elements lane-packed per vreg row (GROUP * EMBED = 128 lanes)


def self_atten_pallas(x, w_qkv, b_qkv, w_in, b_in, w_out, b_out, *,
                      num_heads=HEADS, tbg=16):
    """x: (B, S, D_IN) float32. Returns (B, EMBED) float32 == ReLU(MHA(q,k,v)[:, 0]).

    tbg = packed-batch-groups per grid step (each group = GROUP batch rows).
    tbg=None -> single grid step (best on single-TensorCore chips, v5e/v6e).
    """
    B, S, Din = x.shape
    E = w_out.shape[0]
    hd = E // num_heads
    scale = 1.0 / math.sqrt(hd)
    G = GROUP
    GE = G * E
    GDin = G * Din

    # ---- wrapper-side parameter fusion (tiny matmuls, done once per call) ----
    # Linear(8->E) followed by the MHA in_proj (E->E) collapses into one (8->E) affine map.
    # The softmax scale is folded into the query weights/bias for free.
    wq = (w_qkv[:, 0:E] @ w_in[:, 0:E]) * scale                          # (Din, E)
    bq = (b_qkv[:, 0:E] @ w_in[:, 0:E] + b_in[:, 0:E]) * scale           # (1, E)
    wk = w_qkv[:, E:2 * E] @ w_in[:, E:2 * E]                            # (Din, E)
    bk = b_qkv[:, E:2 * E] @ w_in[:, E:2 * E] + b_in[:, E:2 * E]         # (1, E)
    wv = w_qkv[:, 2 * E:3 * E] @ w_in[:, 2 * E:3 * E]                    # (Din, E)
    bv = b_qkv[:, 2 * E:3 * E] @ w_in[:, 2 * E:3 * E] + b_in[:, 2 * E:3 * E]

    # ---- lane-packing: block-diagonal weights over GROUP packed batch elements ----
    eye_g = jnp.eye(G, dtype=x.dtype)
    wq_bd = jnp.kron(eye_g, wq)                                          # (GDin, GE)
    bq_bd = jnp.tile(bq, (1, G))                                         # (1, GE)
    # Merged K|V projection weight (single matmul over the shared LHS).
    wkv_bd = jnp.concatenate([jnp.kron(eye_g, wk), jnp.kron(eye_g, wv)], axis=1)  # (GDin, 2GE)
    bkv_bd = jnp.concatenate([jnp.tile(bk, (1, G)), jnp.tile(bv, (1, G))], axis=1)  # (1, 2GE)
    wo_bd = jnp.kron(eye_g, w_out)                                       # (GE, GE)
    bo_bd = jnp.tile(b_out, (1, G))                                      # (1, GE)

    # Block-diagonal head-mixing matrix (precomputed, passed as a constant-index input):
    # head_mix[e, f] = 1 iff lanes e and f belong to the same (packed batch, head) block.
    lane_head = jnp.arange(GE) // hd
    head_mix = (lane_head[:, None] == lane_head[None, :]).astype(x.dtype)  # (GE, GE)

    # ---- pack 4 batch elements per vreg row ----
    B_pad_g = ((B + G - 1) // G) * G
    if B_pad_g != B:
        x = jnp.pad(x, ((0, B_pad_g - B), (0, 0), (0, 0)))
    BG = B_pad_g // G
    xp = x.reshape(BG, G, S, Din).transpose(0, 2, 1, 3).reshape(BG, S, GDin)  # (BG, S, 32)

    # ---- batch-group tiling over the grid ----
    if tbg is None or BG <= tbg:
        TBG, BG_pad = BG, BG                       # single step; block dims equal full dims
    else:
        assert tbg % 8 == 0, "tbg must be a multiple of 8 (output sublane constraint)"
        TBG = tbg
        BG_pad = ((BG + TBG - 1) // TBG) * TBG
        if BG_pad != BG:
            xp = jnp.pad(xp, ((0, BG_pad - BG), (0, 0), (0, 0)))

    def kernel(x_ref, wq_ref, bq_ref, wkv_ref, bkv_ref, hm_ref, wo_ref, bo_ref, o_ref):
        tbs = TBG * S
        xb = x_ref[...]                                                   # (TBG, S, GDin)
        xf = xb.reshape(tbs, GDin)                                        # (TBG*S, 32)
        x0 = xb[:, 0, :]                                                  # (TBG, 32) token 0

        # Fused (input Linear ∘ in_proj): merged K|V projection, lane-dense (2GE = 256).
        kv = jnp.dot(xf, wkv_ref[...], preferred_element_type=jnp.float32) + bkv_ref[...]
        k3 = kv[:, :GE].reshape(TBG, S, GE)                               # vreg-boundary slice
        v3 = kv[:, GE:].reshape(TBG, S, GE)

        # Query for token 0 only (softmax scale folded into wq).
        q = jnp.dot(x0, wq_ref[...], preferred_element_type=jnp.float32) + bq_ref[...]

        # Per-(packed batch, head) scores, replicated across each head's hd lanes:
        #   s_exp[b, s, f] = sum_{e in block(f)} q[b, e] * k[b, s, e]
        qk = k3 * q[:, None, :]                                           # (TBG, S, GE)
        s_exp = jnp.dot(qk.reshape(tbs, GE), hm_ref[...],
                        preferred_element_type=jnp.float32).reshape(TBG, S, GE)

        # Softmax over the key axis (axis=1); normalization deferred to after the
        # value-weighted sum and done with an EXACT reciprocal (correctness fix).
        m = jnp.max(s_exp, axis=1, keepdims=True)                         # (TBG, 1, GE)
        p = jnp.exp(s_exp - m)
        denom = jnp.sum(p, axis=1, keepdims=True)                         # (TBG, 1, GE)

        # Attention output for query token 0; lanes already hold concat-of-heads layout.
        o = jnp.sum(p * v3, axis=1) * (1.0 / denom[:, 0, :])              # (TBG, GE)

        # out_proj + ReLU on the single token per batch row (lane-dense 128-wide store).
        y = jnp.dot(o, wo_ref[...], preferred_element_type=jnp.float32) + bo_ref[...]
        o_ref[...] = jnp.maximum(y, 0.0).astype(o_ref.dtype)

    out_p = pl.pallas_call(
        kernel,
        out_shape=jax.ShapeDtypeStruct((BG_pad, GE), x.dtype),
        grid=(BG_pad // TBG,),
        in_specs=[
            pl.BlockSpec((TBG, S, GDin), lambda b: (b, 0, 0)),    # packed token block
            pl.BlockSpec((GDin, GE), lambda b: (0, 0)),           # fused Q weight (scale folded)
            pl.BlockSpec((1, GE), lambda b: (0, 0)),              # fused Q bias
            pl.BlockSpec((GDin, 2 * GE), lambda b: (0, 0)),       # fused merged K|V weight
            pl.BlockSpec((1, 2 * GE), lambda b: (0, 0)),          # fused merged K|V bias
            pl.BlockSpec((GE, GE), lambda b: (0, 0)),             # head-mixing constant
            pl.BlockSpec((GE, GE), lambda b: (0, 0)),             # out_proj weight (block-diag)
            pl.BlockSpec((1, GE), lambda b: (0, 0)),              # out_proj bias (tiled)
        ],
        out_specs=pl.BlockSpec((TBG, GE), lambda b: (b, 0)),
        compiler_params=pltpu.CompilerParams(dimension_semantics=("parallel",)),
    )(xp, wq_bd, bq_bd, wkv_bd, bkv_bd, head_mix, wo_bd, bo_bd)

    # Unpack: (BG, G*E) -> (BG*G, E) is a free contiguous reshape.
    return out_p[:BG].reshape(BG * G, E)[:B]


def self_atten_ref(x, w_qkv, b_qkv, w_in, b_in, w_out, b_out, num_heads=HEADS):
    """Pure-JAX reference matching torch semantics (unfused), for correctness check."""
    B, S, _ = x.shape
    E = w_out.shape[0]
    hd = E // num_heads
    p = x @ w_qkv + b_qkv
    q, k, v = p[..., :E], p[..., E:2 * E], p[..., 2 * E:]
    qi = q @ w_in[:, :E] + b_in[:, :E]
    ki = k @ w_in[:, E:2 * E] + b_in[:, E:2 * E]
    vi = v @ w_in[:, 2 * E:] + b_in[:, 2 * E:]

    def split(t):
        return t.reshape(B, S, num_heads, hd).transpose(0, 2, 1, 3)

    qh, kh, vh = split(qi), split(ki), split(vi)
    s = jnp.einsum('bhqd,bhkd->bhqk', qh, kh) / math.sqrt(hd)
    a = jax.nn.softmax(s, axis=-1)
    o = jnp.einsum('bhqk,bhkd->bhqd', a, vh).transpose(0, 2, 1, 3).reshape(B, S, E)
    y = o @ w_out + b_out
    return jnp.maximum(y[:, 0], 0.0)


if __name__ == "__main__":
    # B=128 packed 4-wide -> 32 batch groups; tbg=16 -> grid of 2 parallel steps
    # (keeps both v7x TensorCores busy; on v5e/v6e pass tbg=None for a single step).
    B, S = 128, 8
    key = jax.random.PRNGKey(0)
    ks = jax.random.split(key, 7)

    x = jax.random.normal(ks[0], (B, S, D_IN), jnp.float32)

    # Deterministic synthetic parameters (shapes follow the module's __init__):
    #   query/key/value: Linear(8, E) each -> fused (8, 3E) + (1, 3E)
    #   MHA in_proj_weight (3E, E) -> stored transposed (E, 3E); in_proj_bias (1, 3E)
    #   MHA out_proj: Linear(E, E) -> (E, E) + (1, E)
    w_qkv = jax.random.normal(ks[1], (D_IN, 3 * EMBED), jnp.float32) / math.sqrt(D_IN)
    b_qkv = jax.random.normal(ks[2], (1, 3 * EMBED), jnp.float32) * 0.01
    w_in = jax.random.normal(ks[3], (EMBED, 3 * EMBED), jnp.float32) / math.sqrt(EMBED)
    b_in = jax.random.normal(ks[4], (1, 3 * EMBED), jnp.float32) * 0.01
    w_out = jax.random.normal(ks[5], (EMBED, EMBED), jnp.float32) / math.sqrt(EMBED)
    b_out = jax.random.normal(ks[6], (1, EMBED), jnp.float32) * 0.01

    out = self_atten_pallas(x, w_qkv, b_qkv, w_in, b_in, w_out, b_out, tbg=16)
    out = jax.block_until_ready(out)

    ref = self_atten_ref(x, w_qkv, b_qkv, w_in, b_in, w_out, b_out)
    assert out.shape == (B, EMBED), out.shape
    max_err = float(jnp.max(jnp.abs(out - ref)))
    assert jnp.allclose(out, ref, atol=1e-4, rtol=1e-4), max_err

    print("KERNEL_OK")
</pallas_src>

<mosaic_0001>
module attributes {stable_mosaic.version = 11 : i64} {
  func.func @kernel(%arg0: i32, %arg1: memref<16x8x32xf32, #tpu.memory_space<vmem>>, %arg2: memref<32x128xf32, #tpu.memory_space<vmem>>, %arg3: memref<1x128xf32, #tpu.memory_space<vmem>>, %arg4: memref<32x256xf32, #tpu.memory_space<vmem>>, %arg5: memref<1x256xf32, #tpu.memory_space<vmem>>, %arg6: memref<128x128xf32, #tpu.memory_space<vmem>>, %arg7: memref<128x128xf32, #tpu.memory_space<vmem>>, %arg8: memref<1x128xf32, #tpu.memory_space<vmem>>, %arg9: memref<16x128xf32, #tpu.memory_space<vmem>>) attributes {dimension_semantics = [#tpu.dimension_semantics<parallel>], iteration_bounds = array<i64: 2>, scalar_prefetch = 0 : i64, scratch_operands = 0 : i64, tpu.core_type = #tpu.core_type<tc>, window_params = [{transform_indices = @transform_0, window_bounds = array<i64: 16, 8, 32>}, {pipeline_mode = #tpu.pipeline_mode<synchronous>, transform_indices = @transform_1, window_bounds = array<i64: 32, 128>}, {pipeline_mode = #tpu.pipeline_mode<synchronous>, transform_indices = @transform_2, window_bounds = array<i64: 1, 128>}, {pipeline_mode = #tpu.pipeline_mode<synchronous>, transform_indices = @transform_3, window_bounds = array<i64: 32, 256>}, {pipeline_mode = #tpu.pipeline_mode<synchronous>, transform_indices = @transform_4, window_bounds = array<i64: 1, 256>}, {pipeline_mode = #tpu.pipeline_mode<synchronous>, transform_indices = @transform_5, window_bounds = array<i64: 128, 128>}, {pipeline_mode = #tpu.pipeline_mode<synchronous>, transform_indices = @transform_6, window_bounds = array<i64: 128, 128>}, {pipeline_mode = #tpu.pipeline_mode<synchronous>, transform_indices = @transform_7, window_bounds = array<i64: 1, 128>}, {transform_indices = @transform_8, window_bounds = array<i64: 16, 128>}]} {
    %c0 = arith.constant 0 : index
    %c0_0 = arith.constant 0 : index
    %c0_1 = arith.constant 0 : index
    %0 = vector.load %arg1[%c0, %c0_0, %c0_1] : memref<16x8x32xf32, #tpu.memory_space<vmem>>, vector<16x8x32xf32>
    %1 = vector.shape_cast %0 : vector<16x8x32xf32> to vector<128x32xf32>
    %2 = vector.extract_strided_slice %0 {offsets = [0, 0, 0], sizes = [16, 1, 32], strides = [1, 1, 1]} : vector<16x8x32xf32> to vector<16x1x32xf32>
    %3 = vector.shape_cast %2 : vector<16x1x32xf32> to vector<16x32xf32>
    %c0_2 = arith.constant 0 : index
    %c0_3 = arith.constant 0 : index
    %4 = vector.load %arg4[%c0_2, %c0_3] : memref<32x256xf32, #tpu.memory_space<vmem>>, vector<32x256xf32>
    %cst = arith.constant dense<0.000000e+00> : vector<128x256xf32>
    %5 = tpu.matmul %1, %4, %cst {dimension_numbers = #tpu.dot_dimension_numbers<[1], [0], [0], [1], [0, 0, 1, 1], [], []>} : vector<128x32xf32>, vector<32x256xf32>, vector<128x256xf32> -> vector<128x256xf32>
    %c0_4 = arith.constant 0 : index
    %c0_5 = arith.constant 0 : index
    %6 = vector.load %arg5[%c0_4, %c0_5] : memref<1x256xf32, #tpu.memory_space<vmem>>, vector<1x256xf32>
    %7 = vector.broadcast %6 : vector<1x256xf32> to vector<128x256xf32>
    %8 = arith.addf %5, %7 : vector<128x256xf32>
    %9 = vector.extract_strided_slice %8 {offsets = [0, 0], sizes = [128, 128], strides = [1, 1]} : vector<128x256xf32> to vector<128x128xf32>
    %10 = vector.shape_cast %9 : vector<128x128xf32> to vector<16x8x128xf32>
    %11 = vector.extract_strided_slice %8 {offsets = [0, 128], sizes = [128, 128], strides = [1, 1]} : vector<128x256xf32> to vector<128x128xf32>
    %12 = vector.shape_cast %11 : vector<128x128xf32> to vector<16x8x128xf32>
    %c0_6 = arith.constant 0 : index
    %c0_7 = arith.constant 0 : index
    %13 = vector.load %arg2[%c0_6, %c0_7] : memref<32x128xf32, #tpu.memory_space<vmem>>, vector<32x128xf32>
    %cst_8 = arith.constant dense<0.000000e+00> : vector<16x128xf32>
    %14 = tpu.matmul %3, %13, %cst_8 {dimension_numbers = #tpu.dot_dimension_numbers<[1], [0], [0], [1], [0, 0, 1, 1], [], []>} : vector<16x32xf32>, vector<32x128xf32>, vector<16x128xf32> -> vector<16x128xf32>
    %c0_9 = arith.constant 0 : index
    %c0_10 = arith.constant 0 : index
    %15 = vector.load %arg3[%c0_9, %c0_10] : memref<1x128xf32, #tpu.memory_space<vmem>>, vector<1x128xf32>
    %16 = vector.broadcast %15 : vector<1x128xf32> to vector<16x128xf32>
    %17 = arith.addf %14, %16 : vector<16x128xf32>
    %18 = vector.shape_cast %17 : vector<16x128xf32> to vector<16x1x128xf32>
    %19 = vector.broadcast %18 : vector<16x1x128xf32> to vector<16x8x128xf32>
    %20 = arith.mulf %10, %19 : vector<16x8x128xf32>
    %21 = vector.shape_cast %20 : vector<16x8x128xf32> to vector<128x128xf32>
    %c0_11 = arith.constant 0 : index
    %c0_12 = arith.constant 0 : index
    %22 = vector.load %arg6[%c0_11, %c0_12] : memref<128x128xf32, #tpu.memory_space<vmem>>, vector<128x128xf32>
    %cst_13 = arith.constant dense<0.000000e+00> : vector<128x128xf32>
    %23 = tpu.matmul %21, %22, %cst_13 {dimension_numbers = #tpu.dot_dimension_numbers<[1], [0], [0], [1], [0, 0, 1, 1], [], []>} : vector<128x128xf32>, vector<128x128xf32>, vector<128x128xf32> -> vector<128x128xf32>
    %24 = vector.shape_cast %23 : vector<128x128xf32> to vector<16x8x128xf32>
    %cst_14 = arith.constant dense<0xFF800000> : vector<16x128xf32>
    %25 = vector.multi_reduction <maximumf>, %24, %cst_14 [1] : vector<16x8x128xf32> to vector<16x128xf32>
    %26 = vector.shape_cast %25 : vector<16x128xf32> to vector<16x1x128xf32>
    %27 = vector.broadcast %26 : vector<16x1x128xf32> to vector<16x8x128xf32>
    %28 = arith.subf %24, %27 : vector<16x8x128xf32>
    %29 = math.exp %28 : vector<16x8x128xf32>
    %cst_15 = arith.constant dense<0.000000e+00> : vector<16x128xf32>
    %30 = vector.multi_reduction <add>, %29, %cst_15 [1] : vector<16x8x128xf32> to vector<16x128xf32>
    %31 = vector.shape_cast %30 : vector<16x128xf32> to vector<16x1x128xf32>
    %32 = arith.mulf %29, %12 : vector<16x8x128xf32>
    %cst_16 = arith.constant dense<0.000000e+00> : vector<16x128xf32>
    %33 = vector.multi_reduction <add>, %32, %cst_16 [1] : vector<16x8x128xf32> to vector<16x128xf32>
    %34 = vector.shape_cast %31 : vector<16x1x128xf32> to vector<16x128xf32>
    %cst_17 = arith.constant 1.000000e+00 : f32
    %35 = vector.broadcast %cst_17 : f32 to vector<16x128xf32>
    %36 = arith.divf %35, %34 : vector<16x128xf32>
    %37 = arith.mulf %33, %36 : vector<16x128xf32>
    %c0_18 = arith.constant 0 : index
    %c0_19 = arith.constant 0 : index
    %38 = vector.load %arg7[%c0_18, %c0_19] : memref<128x128xf32, #tpu.memory_space<vmem>>, vector<128x128xf32>
    %cst_20 = arith.constant dense<0.000000e+00> : vector<16x128xf32>
    %39 = tpu.matmul %37, %38, %cst_20 {dimension_numbers = #tpu.dot_dimension_numbers<[1], [0], [0], [1], [0, 0, 1, 1], [], []>} : vector<16x128xf32>, vector<128x128xf32>, vector<16x128xf32> -> vector<16x128xf32>
    %c0_21 = arith.constant 0 : index
    %c0_22 = arith.constant 0 : index
    %40 = vector.load %arg8[%c0_21, %c0_22] : memref<1x128xf32, #tpu.memory_space<vmem>>, vector<1x128xf32>
    %41 = vector.broadcast %40 : vector<1x128xf32> to vector<16x128xf32>
    %42 = arith.addf %39, %41 : vector<16x128xf32>
    %cst_23 = arith.constant 0.000000e+00 : f32
    %43 = vector.broadcast %cst_23 : f32 to vector<16x128xf32>
    %44 = arith.maximumf %42, %43 : vector<16x128xf32>
    %c0_24 = arith.constant 0 : index
    %c0_25 = arith.constant 0 : index
    %45 = vector.load %arg9[%c0_24, %c0_25] : memref<16x128xf32, #tpu.memory_space<vmem>>, vector<16x128xf32>
    tpu.vector_store %arg9[%c0_24, %c0_25], %44 {strides = array<i32>} : memref<16x128xf32, #tpu.memory_space<vmem>>, vector<16x128xf32>,
    return
  }
  func.func @transform_0(%arg0: i32) -> (i32, i32, i32) {
    %c0_i32 = arith.constant 0 : i32
    %c0_i32_0 = arith.constant 0 : i32
    %c0_i32_1 = arith.constant 0 : i32
    return %arg0, %c0_i32, %c0_i32_0 : i32, i32, i32
  }
  func.func @transform_1(%arg0: i32) -> (i32, i32) {
    %c0_i32 = arith.constant 0 : i32
    %c0_i32_0 = arith.constant 0 : i32
    %c0_i32_1 = arith.constant 0 : i32
    return %c0_i32, %c0_i32_0 : i32, i32
  }
  func.func @transform_2(%arg0: i32) -> (i32, i32) {
    %c0_i32 = arith.constant 0 : i32
    %c0_i32_0 = arith.constant 0 : i32
    %c0_i32_1 = arith.constant 0 : i32
    return %c0_i32, %c0_i32_0 : i32, i32
  }
  func.func @transform_3(%arg0: i32) -> (i32, i32) {
    %c0_i32 = arith.constant 0 : i32
    %c0_i32_0 = arith.constant 0 : i32
    %c0_i32_1 = arith.constant 0 : i32
    return %c0_i32, %c0_i32_0 : i32, i32
  }
  func.func @transform_4(%arg0: i32) -> (i32, i32) {
    %c0_i32 = arith.constant 0 : i32
    %c0_i32_0 = arith.constant 0 : i32
    %c0_i32_1 = arith.constant 0 : i32
    return %c0_i32, %c0_i32_0 : i32, i32
  }
  func.func @transform_5(%arg0: i32) -> (i32, i32) {
    %c0_i32 = arith.constant 0 : i32
    %c0_i32_0 = arith.constant 0 : i32
    %c0_i32_1 = arith.constant 0 : i32
    return %c0_i32, %c0_i32_0 : i32, i32
  }
  func.func @transform_6(%arg0: i32) -> (i32, i32) {
    %c0_i32 = arith.constant 0 : i32
    %c0_i32_0 = arith.constant 0 : i32
    %c0_i32_1 = arith.constant 0 : i32
    return %c0_i32, %c0_i32_0 : i32, i32
  }
  func.func @transform_7(%arg0: i32) -> (i32, i32) {
    %c0_i32 = arith.constant 0 : i32
    %c0_i32_0 = arith.constant 0 : i32
    %c0_i32_1 = arith.constant 0 : i32
    return %c0_i32, %c0_i32_0 : i32, i32
  }
  func.func @transform_8(%arg0: i32) -> (i32, i32) {
    %c0_i32 = arith.constant 0 : i32
    %c0_i32_0 = arith.constant 0 : i32
    return %arg0, %c0_i32 : i32, i32
  }
}

</mosaic_0001>

<llo_original>
// kernel: tpu_custom_call.1
$region0: #{tpu_custom_call.1}
  #allocation0 [shape = 'u32[]', space=smem, size = 0x4, offset = 0x4, fixed_abs, tag = 'smem constant byte address 0x4 - core index']
  #allocation1 [shape = 'u32[144,128]{1,0:T(1,128)}', space=vmem, size = 0x12000, scoped, tag = 'internal scratch']
  %s0 = inlined_call_operand.hbm [shape: f32[32,8,32], index: 0, kind: input, shape index: {}]
  %s1 = inlined_call_operand.hbm [shape: f32[32,128], index: 1, kind: input, shape index: {}]
  %s2 = inlined_call_operand.vmem [shape: f32[1,128], index: 2, kind: input, shape index: {}]
  %s3 = inlined_call_operand.hbm [shape: f32[32,256], index: 3, kind: input, shape index: {}]
  %s4 = inlined_call_operand.vmem [shape: f32[1,256], index: 4, kind: input, shape index: {}]
  %s5 = inlined_call_operand.hbm [shape: f32[128,128], index: 5, kind: input, shape index: {}]
  %s6 = inlined_call_operand.hbm [shape: f32[128,128], index: 6, kind: input, shape index: {}]
  %s7 = inlined_call_operand.vmem [shape: f32[1,128], index: 7, kind: input, shape index: {}]
  %s8 = inlined_call_operand.hbm [shape: f32[32,128], index: 8, kind: output, shape index: {}]
  %s9 = sld [smem:[#allocation0]]
  $region85: #{tpu_custom_call.1} parent=0
    _
  %s11 = ssub.s32 1, %s9
  %s12 = scalar_select 0, %s11, %s9
  $region1: #{tpu_custom_call.1} parent=0
    #allocation2 [shape = 'u8[131072]{0}', space=vmem, size = 0x20000, scoped, tag = 'input window, operand 0']
    #allocation3 [shape = 's32[2]{0}', space=sflag, size = 0x8, scoped, tag = 'scoped memory for tpu_custom_call.1']
    #allocation4 [shape = 's32[2]{0}', space=sflag, size = 0x8, scoped, tag = 'scoped memory for tpu_custom_call.1']
    #allocation5 [shape = 'u8[16384]{0}', space=vmem, size = 0x4000, scoped, tag = 'input window, operand 1, single buffered']
    #allocation6 [shape = 's32[1]{0}', space=sflag, size = 0x4, scoped, tag = 'scoped memory for tpu_custom_call.1']
    #allocation7 [shape = 'u8[32768]{0}', space=vmem, size = 0x8000, scoped, tag = 'input window, operand 3, single buffered']
    #allocation8 [shape = 'u8[65536]{0}', space=vmem, size = 0x10000, scoped, tag = 'input window, operand 5, single buffered']
    #allocation9 [shape = 's32[1]{0}', space=sflag, size = 0x4, scoped, tag = 'scoped memory for tpu_custom_call.1']
    #allocation10 [shape = 'u8[65536]{0}', space=vmem, size = 0x10000, scoped, tag = 'input window, operand 6, single buffered']
    #allocation11 [shape = 'u8[16384]{0}', space=vmem, size = 0x4000, scoped, tag = 'output window, operand 0']
    %13 = vsyncpa [#allocation3], 0
    %s14 = scalar_lea.sflag [#allocation3], 1
    %15 = vsyncpa %s14, 0
    %16 = vsyncpa [#allocation6], 0
    %17 = vsyncpa [#allocation9], 0
    %18 = vsyncpa [#allocation4], 0
    %s19 = scalar_lea.sflag [#allocation4], 1
    %20 = vsyncpa %s19, 0
    loop: start=0, step=1, limit=4
    $region2: #{tpu_custom_call.1} parent=1 // loop_pre_header
      _
    $region3: #{tpu_custom_call.1} parent=1 // loop_header
      %s22 = sphi 0, %s26
      %p23 = scmp.ge.s32.totalorder %s22, 4
      %s32 = sphi 0, %s34
      %s35 = sphi 0, %s32
      %s36 = sphi 0, %s35
      %s52 = sphi 0, %s36
      %s56 = sphi 0, %s56
      %s58 = sphi 0, %s56
      %s59 = sphi 0, %s58
      %s73 = sphi 0, %s59
      %s77 = sphi 0, %s77
      %s79 = sphi 0, %s77
      %s80 = sphi 0, %s79
      %s94 = sphi 0, %s80
      %s98 = sphi 0, %s98
      %s100 = sphi 0, %s98
      %s101 = sphi 0, %s100
      %s115 = sphi 0, %s101
      %s119 = sphi 0, %s119
      %s121 = sphi 0, %s119
      %s122 = sphi 0, %s121
      %s136 = sphi 0, %s122
      %s140 = sphi 0, %s140
      %s142 = sphi 0, %s140
      %s143 = sphi 0, %s142
      %s157 = sphi 0, %s143
      %s161 = sphi 0, %s161
      %s163 = sphi 0, %s161
      %s164 = sphi 0, %s163
      %s178 = sphi 0, %s164
      %s182 = sphi 0, %s182
      %s184 = sphi 0, %s182
      %s185 = sphi 0, %s184
      %s199 = sphi 0, %s185
      %s205 = sphi 0, %s207
      %s208 = sphi 0, %s205
      %s209 = sphi 0, %s208
      %s225 = sphi 0, %s209
    $region4: #{tpu_custom_call.1} parent=1 // loop_header_branch
      %25 = sbr.rel (%p23) target = $region8
    $region5: #{tpu_custom_call.1} parent=1 // loop_body
      %s27 = ssub.s32 %s22, 1
      %s28 = ssub.s32 %s22, 2
      %s29 = sadd.s32 %s22, 1
      %s30 = ssub.s32 %s22, %s29
      %p31 = scmp.eq.s32.totalorder %s30, 0
      %s33 = sadd.s32 %s32, 1
      %s34 = scalar_select %p31, %s32, %s33
      %p37 = pneg %p31
      %p38 = scmp.eq.s32.totalorder %s22, 1
      %p39 = por %p37, %p38
      %p40 = scmp.ne.s32.totalorder %s32, %s35
      %p41 = scmp.eq.s32.totalorder %s22, 0
      %p42 = por %p40, %p41
      %p43 = scmp.ne.s32.totalorder %s32, %s35
      %p44 = scmp.eq.s32.totalorder %s27, 1
      %p45 = por %p43, %p44
      %p46 = scmp.ne.s32.totalorder %s35, %s36
      %p47 = scmp.eq.s32.totalorder %s27, 0
      %p48 = por %p46, %p47
      %p49 = scmp.ne.s32.totalorder %s35, %s36
      %p50 = scmp.eq.s32.totalorder %s28, 1
      %p51 = por %p49, %p50
      %p53 = scmp.ne.s32.totalorder %s36, %s52
      %p54 = scmp.eq.s32.totalorder %s28, 0
      %p55 = por %p53, %p54
      %s57 = sadd.s32 %s56, 1
      %p60 = scmp.eq.s32.totalorder %s22, 1
      %p61 = scmp.ne.s32.totalorder %s56, %s58
      %p62 = scmp.eq.s32.totalorder %s22, 0
      %p63 = por %p61, %p62
      %p64 = scmp.ne.s32.totalorder %s56, %s58
      %p65 = scmp.eq.s32.totalorder %s27, 1
      %p66 = por %p64, %p65
      %p67 = scmp.ne.s32.totalorder %s58, %s59
      %p68 = scmp.eq.s32.totalorder %s27, 0
      %p69 = por %p67, %p68
      %p70 = scmp.ne.s32.totalorder %s58, %s59
      %p71 = scmp.eq.s32.totalorder %s28, 1
      %p72 = por %p70, %p71
      %p74 = scmp.ne.s32.totalorder %s59, %s73
      %p75 = scmp.eq.s32.totalorder %s28, 0
      %p76 = por %p74, %p75
      %s78 = sadd.s32 %s77, 1
      %p81 = scmp.eq.s32.totalorder %s22, 1
      %p82 = scmp.ne.s32.totalorder %s77, %s79
      %p83 = scmp.eq.s32.totalorder %s22, 0
      %p84 = por %p82, %p83
      %p85 = scmp.ne.s32.totalorder %s77, %s79
      %p86 = scmp.eq.s32.totalorder %s27, 1
      %p87 = por %p85, %p86
      %p88 = scmp.ne.s32.totalorder %s79, %s80
      %p89 = scmp.eq.s32.totalorder %s27, 0
      %p90 = por %p88, %p89
      %p91 = scmp.ne.s32.totalorder %s79, %s80
      %p92 = scmp.eq.s32.totalorder %s28, 1
      %p93 = por %p91, %p92
      %p95 = scmp.ne.s32.totalorder %s80, %s94
      %p96 = scmp.eq.s32.totalorder %s28, 0
      %p97 = por %p95, %p96
      %s99 = sadd.s32 %s98, 1
      %p102 = scmp.eq.s32.totalorder %s22, 1
      %p103 = scmp.ne.s32.totalorder %s98, %s100
      %p104 = scmp.eq.s32.totalorder %s22, 0
      %p105 = por %p103, %p104
      %p106 = scmp.ne.s32.totalorder %s98, %s100
      %p107 = scmp.eq.s32.totalorder %s27, 1
      %p108 = por %p106, %p107
      %p109 = scmp.ne.s32.totalorder %s100, %s101
      %p110 = scmp.eq.s32.totalorder %s27, 0
      %p111 = por %p109, %p110
      %p112 = scmp.ne.s32.totalorder %s100, %s101
      %p113 = scmp.eq.s32.totalorder %s28, 1
      %p114 = por %p112, %p113
      %p116 = scmp.ne.s32.totalorder %s101, %s115
      %p117 = scmp.eq.s32.totalorder %s28, 0
      %p118 = por %p116, %p117
      %s120 = sadd.s32 %s119, 1
      %p123 = scmp.eq.s32.totalorder %s22, 1
      %p124 = scmp.ne.s32.totalorder %s119, %s121
      %p125 = scmp.eq.s32.totalorder %s22, 0
      %p126 = por %p124, %p125
      %p127 = scmp.ne.s32.totalorder %s119, %s121
      %p128 = scmp.eq.s32.totalorder %s27, 1
      %p129 = por %p127, %p128
      %p130 = scmp.ne.s32.totalorder %s121, %s122
      %p131 = scmp.eq.s32.totalorder %s27, 0
      %p132 = por %p130, %p131
      %p133 = scmp.ne.s32.totalorder %s121, %s122
      %p134 = scmp.eq.s32.totalorder %s28, 1
      %p135 = por %p133, %p134
      %p137 = scmp.ne.s32.totalorder %s122, %s136
      %p138 = scmp.eq.s32.totalorder %s28, 0
      %p139 = por %p137, %p138
      %s141 = sadd.s32 %s140, 1
      %p144 = scmp.eq.s32.totalorder %s22, 1
      %p145 = scmp.ne.s32.totalorder %s140, %s142
      %p146 = scmp.eq.s32.totalorder %s22, 0
      %p147 = por %p145, %p146
      %p148 = scmp.ne.s32.totalorder %s140, %s142
      %p149 = scmp.eq.s32.totalorder %s27, 1
      %p150 = por %p148, %p149
      %p151 = scmp.ne.s32.totalorder %s142, %s143
      %p152 = scmp.eq.s32.totalorder %s27, 0
      %p153 = por %p151, %p152
      %p154 = scmp.ne.s32.totalorder %s142, %s143
      %p155 = scmp.eq.s32.totalorder %s28, 1
      %p156 = por %p154, %p155
      %p158 = scmp.ne.s32.totalorder %s143, %s157
      %p159 = scmp.eq.s32.totalorder %s28, 0
      %p160 = por %p158, %p159
      %s162 = sadd.s32 %s161, 1
      %p165 = scmp.eq.s32.totalorder %s22, 1
      %p166 = scmp.ne.s32.totalorder %s161, %s163
      %p167 = scmp.eq.s32.totalorder %s22, 0
      %p168 = por %p166, %p167
      %p169 = scmp.ne.s32.totalorder %s161, %s163
      %p170 = scmp.eq.s32.totalorder %s27, 1
      %p171 = por %p169, %p170
      %p172 = scmp.ne.s32.totalorder %s163, %s164
      %p173 = scmp.eq.s32.totalorder %s27, 0
      %p174 = por %p172, %p173
      %p175 = scmp.ne.s32.totalorder %s163, %s164
      %p176 = scmp.eq.s32.totalorder %s28, 1
      %p177 = por %p175, %p176
      %p179 = scmp.ne.s32.totalorder %s164, %s178
      %p180 = scmp.eq.s32.totalorder %s28, 0
      %p181 = por %p179, %p180
      %s183 = sadd.s32 %s182, 1
      %p186 = scmp.eq.s32.totalorder %s22, 1
      %p187 = scmp.ne.s32.totalorder %s182, %s184
      %p188 = scmp.eq.s32.totalorder %s22, 0
      %p189 = por %p187, %p188
      %p190 = scmp.ne.s32.totalorder %s182, %s184
      %p191 = scmp.eq.s32.totalorder %s27, 1
      %p192 = por %p190, %p191
      %p193 = scmp.ne.s32.totalorder %s184, %s185
      %p194 = scmp.eq.s32.totalorder %s27, 0
      %p195 = por %p193, %p194
      %p196 = scmp.ne.s32.totalorder %s184, %s185
      %p197 = scmp.eq.s32.totalorder %s28, 1
      %p198 = por %p196, %p197
      %p200 = scmp.ne.s32.totalorder %s185, %s199
      %p201 = scmp.eq.s32.totalorder %s28, 0
      %p202 = por %p200, %p201
      %s203 = ssub.s32 %s22, %s29
      %p204 = scmp.eq.s32.totalorder %s203, 0
      %s206 = sadd.s32 %s205, 1
      %s207 = scalar_select %p204, %s205, %s206
      %p210 = pneg %p204
      %p211 = scmp.eq.s32.totalorder %s22, 1
      %p212 = por %p210, %p211
      %p213 = scmp.ne.s32.totalorder %s205, %s208
      %p214 = scmp.eq.s32.totalorder %s22, 0
      %p215 = por %p213, %p214
      %p216 = scmp.ne.s32.totalorder %s205, %s208
      %p217 = scmp.eq.s32.totalorder %s27, 1
      %p218 = por %p216, %p217
      %p219 = scmp.ne.s32.totalorder %s208, %s209
      %p220 = scmp.eq.s32.totalorder %s27, 0
      %p221 = por %p219, %p220
      %p222 = scmp.ne.s32.totalorder %s208, %s209
      %p223 = scmp.eq.s32.totalorder %s28, 1
      %p224 = por %p222, %p223
      %p226 = scmp.ne.s32.totalorder %s209, %s225
      %p227 = scmp.eq.s32.totalorder %s28, 0
      %p228 = por %p226, %p227
      %p229 = scmp.le.s32.totalorder 1, %s22
      %p230 = scmp.lt.s32.totalorder %s22, 3
      %p231 = pnand %p229, %p230
      %p232 = pneg %p231
      // Predicated region
      $region9: #{tpu_custom_call.1} parent=5 // pred_check
        _
      $region10: #{tpu_custom_call.1} parent=5 // pred_check_branch
        %234 = sbr.rel (%p231) target = $region12
      $region11: #{tpu_custom_call.1} parent=5 // pred_region
        %s235 = ssub.s32 %s22, 1
        // Predicated region
        $region13: #{tpu_custom_call.1} parent=11 // pred_check
          %p236 = pneg %p69
        $region14: #{tpu_custom_call.1} parent=11 // pred_check_branch
          %238 = sbr.rel (%p236) target = $region16
        $region15: #{tpu_custom_call.1} parent=11 // pred_region
          %s240 = ssub.s32 512, 512
          %241 = vsyncadd [#allocation6], %s240
          %s242 = sshll.u32 [#allocation5], 4
          %s243 = int_to_ptr.vmem [resolvable:$true] %s242
          %248 = dma.hbm_to_vmem [thread:$0]  %s1, 512, %s243, [#allocation6], 128, 128, 8
        $region16: #{tpu_custom_call.1} parent=11 // pred_fallthru
          _
        // Predicated region
        $region17: #{tpu_custom_call.1} parent=11 // pred_check
          %p249 = pneg %p90
        $region18: #{tpu_custom_call.1} parent=11 // pred_check_branch
          %251 = sbr.rel (%p249) target = $region20
        $region19: #{tpu_custom_call.1} parent=11 // pred_region
          _
        $region20: #{tpu_custom_call.1} parent=11 // pred_fallthru
          _
        // Predicated region
        $region21: #{tpu_custom_call.1} parent=11 // pred_check
          %p252 = pneg %p111
        $region22: #{tpu_custom_call.1} parent=11 // pred_check_branch
          %254 = sbr.rel (%p252) target = $region24
        $region23: #{tpu_custom_call.1} parent=11 // pred_region
          %s256 = ssub.s32 1024, 1024
          %257 = vsyncadd [#allocation6], %s256
          %s258 = sshll.u32 [#allocation7], 4
          %s259 = int_to_ptr.vmem [resolvable:$true] %s258
          %264 = dma.hbm_to_vmem [thread:$0]  %s3, 1024, %s259, [#allocation6], 256, 256, 16
        $region24: #{tpu_custom_call.1} parent=11 // pred_fallthru
          _
        // Predicated region
        $region25: #{tpu_custom_call.1} parent=11 // pred_check
          %p265 = pneg %p132
        $region26: #{tpu_custom_call.1} parent=11 // pred_check_branch
          %267 = sbr.rel (%p265) target = $region28
        $region27: #{tpu_custom_call.1} parent=11 // pred_region
          _
        $region28: #{tpu_custom_call.1} parent=11 // pred_fallthru
          _
        // Predicated region
        $region29: #{tpu_custom_call.1} parent=11 // pred_check
          %p268 = pneg %p153
        $region30: #{tpu_custom_call.1} parent=11 // pred_check_branch
          %270 = sbr.rel (%p268) target = $region32
        $region31: #{tpu_custom_call.1} parent=11 // pred_region
          %s272 = ssub.s32 2048, 2048
          %273 = vsyncadd [#allocation9], %s272
          %s274 = sshll.u32 [#allocation8], 4
          %s275 = int_to_ptr.vmem [resolvable:$true] %s274
          %280 = dma.hbm_to_vmem [thread:$0]  %s5, 2048, %s275, [#allocation9], 128, 128, 8
        $region32: #{tpu_custom_call.1} parent=11 // pred_fallthru
          _
        // Predicated region
        $region33: #{tpu_custom_call.1} parent=11 // pred_check
          %p281 = pneg %p174
        $region34: #{tpu_custom_call.1} parent=11 // pred_check_branch
          %283 = sbr.rel (%p281) target = $region36
        $region35: #{tpu_custom_call.1} parent=11 // pred_region
          %s285 = ssub.s32 2048, 2048
          %286 = vsyncadd [#allocation9], %s285
          %s287 = sshll.u32 [#allocation10], 4
          %s288 = int_to_ptr.vmem [resolvable:$true] %s287
          %293 = dma.hbm_to_vmem [thread:$0]  %s6, 2048, %s288, [#allocation9], 128, 128, 8
        $region36: #{tpu_custom_call.1} parent=11 // pred_fallthru
          _
        // Predicated region
        $region37: #{tpu_custom_call.1} parent=11 // pred_check
          %p294 = pneg %p195
        $region38: #{tpu_custom_call.1} parent=11 // pred_check_branch
          %296 = sbr.rel (%p294) target = $region40
        $region39: #{tpu_custom_call.1} parent=11 // pred_region
          _
        $region40: #{tpu_custom_call.1} parent=11 // pred_fallthru
          _
      $region12: #{tpu_custom_call.1} parent=5 // pred_fallthru
        _
      %p297 = scmp.lt.s32.totalorder %s22, 2
      // Predicated region
      $region41: #{tpu_custom_call.1} parent=5 // pred_check
        %p298 = pneg %p297
      $region42: #{tpu_custom_call.1} parent=5 // pred_check_branch
        %300 = sbr.rel (%p298) target = $region44
      $region43: #{tpu_custom_call.1} parent=5 // pred_region
        // Predicated region
        $region45: #{tpu_custom_call.1} parent=43 // pred_check
          %p301 = pneg %p42
        $region46: #{tpu_custom_call.1} parent=43 // pred_check_branch
          %303 = sbr.rel (%p301) target = $region48
        $region47: #{tpu_custom_call.1} parent=43 // pred_region
          %s304 = sand.u32 %s32, 1
          %s305 = scalar_lea.sflag [#allocation3], %s304
          %s306 = sand.u32 %s32, 1
          %s307 = smul.addr %s306, 128
          %s308 = scalar_lea.vmem [#allocation2], %s307
          %s309 = smul.u32 16, %s22
          %s311 = ssub.s32 2048, 2048
          %312 = vsyncadd %s305, %s311
          %s313 = smul.addr %s309, 128
          %s314 = scalar_lea.hbm %s0, %s313
          %s315 = sshll.u32 %s308, 4
          %s316 = int_to_ptr.vmem [resolvable:$true] %s315
          %321 = dma.hbm_to_vmem [thread:$0]  %s314, 2048, %s316, %s305, 128, 128, 8
        $region48: #{tpu_custom_call.1} parent=43 // pred_fallthru
          _
      $region44: #{tpu_custom_call.1} parent=5 // pred_fallthru
        _
      %p322 = scmp.le.s32.totalorder 1, %s22
      %p323 = scmp.lt.s32.totalorder %s22, 3
      %p324 = pnand %p322, %p323
      %p325 = pneg %p324
      // Predicated region
      $region49: #{tpu_custom_call.1} parent=5 // pred_check
        _
      $region50: #{tpu_custom_call.1} parent=5 // pred_check_branch
        %327 = sbr.rel (%p324) target = $region52
      $region51: #{tpu_custom_call.1} parent=5 // pred_region
        %s328 = ssub.s32 %s22, 1
        %s329 = sand.u32 %s35, 1
        %s330 = scalar_lea.sflag [#allocation3], %s329
        %s331 = sand.u32 %s35, 1
        %s332 = smul.addr %s331, 128
        %s333 = scalar_lea.vmem [#allocation2], %s332
        // Predicated region
        $region53: #{tpu_custom_call.1} parent=51 // pred_check
          %p334 = pneg %p48
        $region54: #{tpu_custom_call.1} parent=51 // pred_check_branch
          %336 = sbr.rel (%p334) target = $region56
        $region55: #{tpu_custom_call.1} parent=51 // pred_region
          %337 = dma.done %s330, 2048
        $region56: #{tpu_custom_call.1} parent=51 // pred_fallthru
          _
        // Predicated region
        $region57: #{tpu_custom_call.1} parent=51 // pred_check
          %p338 = pneg %p69
        $region58: #{tpu_custom_call.1} parent=51 // pred_check_branch
          %340 = sbr.rel (%p338) target = $region60
        $region59: #{tpu_custom_call.1} parent=51 // pred_region
          %341 = dma.done [#allocation6], 512
        $region60: #{tpu_custom_call.1} parent=51 // pred_fallthru
          _
        // Predicated region
        $region61: #{tpu_custom_call.1} parent=51 // pred_check
          %p342 = pneg %p111
        $region62: #{tpu_custom_call.1} parent=51 // pred_check_branch
          %344 = sbr.rel (%p342) target = $region64
        $region63: #{tpu_custom_call.1} parent=51 // pred_region
          %345 = dma.done [#allocation6], 1024
        $region64: #{tpu_custom_call.1} parent=51 // pred_fallthru
          _
        // Predicated region
        $region65: #{tpu_custom_call.1} parent=51 // pred_check
          %p346 = pneg %p153
        $region66: #{tpu_custom_call.1} parent=51 // pred_check_branch
          %348 = sbr.rel (%p346) target = $region68
        $region67: #{tpu_custom_call.1} parent=51 // pred_region
          %349 = dma.done [#allocation9], 2048
        $region68: #{tpu_custom_call.1} parent=51 // pred_fallthru
          _
        // Predicated region
        $region69: #{tpu_custom_call.1} parent=51 // pred_check
          %p350 = pneg %p174
        $region70: #{tpu_custom_call.1} parent=51 // pred_check_branch
          %352 = sbr.rel (%p350) target = $region72
        $region71: #{tpu_custom_call.1} parent=51 // pred_region
          %353 = dma.done [#allocation9], 2048
        $region72: #{tpu_custom_call.1} parent=51 // pred_fallthru
          _
        %s354 = sand.u32 %s35, 1
        %s355 = scalar_lea.sflag [#allocation3], %s354
        %s356 = sand.u32 %s35, 1
        %s357 = smul.addr %s356, 128
        %s358 = scalar_lea.vmem [#allocation2], %s357
        %p359 = pneg %p48
        %p360 = pneg %p45
        %p361 = pneg %p69
        %p362 = pneg %p66
        %p363 = pneg %p90
        %p364 = pneg %p87
        %p365 = pneg %p111
        %p366 = pneg %p108
        %p367 = pneg %p132
        %p368 = pneg %p129
        %p369 = pneg %p153
        %p370 = pneg %p150
        %p371 = pneg %p174
        %p372 = pneg %p171
        %p373 = pneg %p195
        %p374 = pneg %p192
        %p375 = pneg %p221
        %p376 = pneg %p218
        %s377 = sand.u32 %s208, 1
        %s378 = scalar_lea.sflag [#allocation4], %s377
        %s379 = sand.u32 %s208, 1
        %s380 = smul.addr %s379, 16
        %s381 = scalar_lea.vmem [#allocation11], %s380
        %s382 = smul.u32 16, %s27
        %s383 = smul.u32 2, %s27
        %v384 = vld [vmem:[%s333] sm:$0xff]
        %v385 = vld [vmem:[%s333 + $0x8] sm:$0xff]
        %v386 = vld [vmem:[%s333 + $0x10] sm:$0xff]
        %v387 = vld [vmem:[%s333 + $0x18] sm:$0xff]
        %v388 = vld [vmem:[%s333 + $0x20] sm:$0xff]
        %v389 = vld [vmem:[%s333 + $0x28] sm:$0xff]
        %v390 = vld [vmem:[%s333 + $0x30] sm:$0xff]
        %v391 = vld [vmem:[%s333 + $0x38] sm:$0xff]
        %v392 = vld [vmem:[%s333 + $0x40] sm:$0xff]
        %v393 = vld [vmem:[%s333 + $0x48] sm:$0xff]
        %v394 = vld [vmem:[%s333 + $0x50] sm:$0xff]
        %v395 = vld [vmem:[%s333 + $0x58] sm:$0xff]
        %v396 = vld [vmem:[%s333 + $0x60] sm:$0xff]
        %v397 = vld [vmem:[%s333 + $0x68] sm:$0xff]
        %v398 = vld [vmem:[%s333 + $0x70] sm:$0xff]
        %v399 = vld [vmem:[%s333 + $0x78] sm:$0xff]
        %v400 = vld [vmem:[#allocation7] sm:$0xff]
        %v401 = vld [vmem:[#allocation7 + $0x8] sm:$0xff]
        %v402 = vld [vmem:[#allocation7 + $0x10] sm:$0xff]
        %v403 = vld [vmem:[#allocation7 + $0x18] sm:$0xff]
        %v404 = vld [vmem:[#allocation7 + $0x20] sm:$0xff]
        %v405 = vld [vmem:[#allocation7 + $0x28] sm:$0xff]
        %v406 = vld [vmem:[#allocation7 + $0x30] sm:$0xff]
        %v407 = vld [vmem:[#allocation7 + $0x38] sm:$0xff]
        %v408 = vld [vmem:[%s4] sm:$0x3]
        %v410 = vlaneseq
        %v411 = vshrl.u32 %v410, 7
        %v412 = vsub.s32 0, %v411
        %v413 = vrot.slane %v408, %v412
        %v414 = vlaneseq
        %v415 = vshrl.u32 %v414, 7
        %v416 = vsub.s32 1, %v415
        %v417 = vrot.slane %v408, %v416
        %vm420 = vcmask 261120
        %v422 = vsel %vm420, %v384, 0
        %v425 = vsel %vm420, %v385, 0
        %v428 = vsel %vm420, %v386, 0
        %v431 = vsel %vm420, %v387, 0
        %v434 = vsel %vm420, %v388, 0
        %v437 = vsel %vm420, %v389, 0
        %v440 = vsel %vm420, %v390, 0
        %v443 = vsel %vm420, %v391, 0
        %v446 = vsel %vm420, %v392, 0
        %v449 = vsel %vm420, %v393, 0
        %v452 = vsel %vm420, %v394, 0
        %v455 = vsel %vm420, %v395, 0
        %v458 = vsel %vm420, %v396, 0
        %v461 = vsel %vm420, %v397, 0
        %v464 = vsel %vm420, %v398, 0
        %v467 = vsel %vm420, %v399, 0
        %469 = vmatprep.subr.mxu0 %v401
        %470 = vmatpush1.msra.mxu0 %v400
        %471 = vmatprep.subr.mxu0 %v403
        %472 = vmatpush1.msra.mxu0 %v402
        %473 = vmatprep.subr.mxu0 %v405
        %474 = vmatpush1.msra.mxu0 %v404
        %475 = vmatprep.subr.mxu0 %v407
        %476 = vmatpush1.msra.mxu0 %v406
        %477 = vmatprep.subr.mxu0 0.0
        %478 = vmatpush1.msra.mxu0 0.0
        %479 = vmatprep.subr.mxu0 0.0
        %480 = vmatpush1.msra.mxu0 0.0
        %481 = vmatprep.subr.mxu0 0.0
        %482 = vmatpush1.msra.mxu0 0.0
        %483 = vmatprep.subr.mxu0 0.0
        %484 = vmatpush1.msra.mxu0 0.0
        %485 = vmatprep.subr.mxu0 0.0
        %486 = vmatpush1.msra.mxu0 0.0
        %487 = vmatprep.subr.mxu0 0.0
        %488 = vmatpush1.msra.mxu0 0.0
        %489 = vmatprep.subr.mxu0 0.0
        %490 = vmatpush1.msra.mxu0 0.0
        %491 = vmatprep.subr.mxu0 0.0
        %492 = vmatpush1.msra.mxu0 0.0
        %493 = vmatprep.subr.mxu0 0.0
        %494 = vmatpush1.msra.mxu0 0.0
        %495 = vmatprep.subr.mxu0 0.0
        %496 = vmatpush1.msra.mxu0 0.0
        %497 = vmatprep.subr.mxu0 0.0
        %498 = vmatpush1.msra.mxu0 0.0
        %499 = vmatprep.subr.mxu0 0.0
        %500 = vmatpush1.msra.mxu0 0.0
        %501 = vmatprep.subr.mxu0 0.0
        %502 = vmatpush1.msra.mxu0 0.0
        %503 = vmatprep.subr.mxu0 0.0
        %504 = vmatpush1.msra.mxu0 0.0
        %505 = vmatprep.subr.mxu0 0.0
        %506 = vmatpush1.msra.mxu0 0.0
        %507 = vmatprep.subr.mxu0 0.0
        %508 = vmatpush1.msra.mxu0 0.0
        %509 = vmatprep.subr.mxu0 0.0
        %510 = vmatpush1.msra.mxu0 0.0
        %511 = vmatprep.subr.mxu0 0.0
        %512 = vmatpush1.msra.mxu0 0.0
        %513 = vmatprep.subr.mxu0 0.0
        %514 = vmatpush1.msra.mxu0 0.0
        %515 = vmatprep.subr.mxu0 0.0
        %516 = vmatpush1.msra.mxu0 0.0
        %517 = vmatprep.subr.mxu0 0.0
        %518 = vmatpush1.msra.mxu0 0.0
        %519 = vmatprep.subr.mxu0 0.0
        %520 = vmatpush1.msra.mxu0 0.0
        %521 = vmatprep.subr.mxu0 0.0
        %522 = vmatpush1.msra.mxu0 0.0
        %523 = vmatprep.subr.mxu0 0.0
        %524 = vmatpush1.msra.mxu0 0.0
        %525 = vmatprep.subr.mxu0 0.0
        %526 = vmatpush1.msra.mxu0 0.0
        %527 = vmatprep.subr.mxu0 0.0
        %528 = vmatpush1.msra.mxu0 0.0
        %529 = vmatprep.subr.mxu0 0.0
        %530 = vmatpush1.msra.mxu0 0.0
        %531 = vmatprep.subr.mxu0 0.0
        %532 = vmatpush1.msra.mxu0 0.0
        %533 = vmatprep.mubr.f32.mxu0 0.0
        %534 = vmatmul.mubr.f32.gmra.mrb[0].mxu0 %v422
        %v535 = vpop.f32.mrb[0].mxu0
        %v536 = vadd.f32 %v413, %v535
        %v537 = vpop.f32.mrb[0].mxu0
        %v538 = vadd.f32 %v417, %v537
        %539 = vmatprep.mubr.f32.mxu0 0.0
        %540 = vmatmul.mubr.f32.gmra.mrb[0].mxu0 %v425
        %v541 = vpop.f32.mrb[0].mxu0
        %v542 = vadd.f32 %v413, %v541
        %v543 = vpop.f32.mrb[0].mxu0
        %v544 = vadd.f32 %v417, %v543
        %545 = vmatprep.mubr.f32.mxu0 0.0
        %546 = vmatmul.mubr.f32.gmra.mrb[0].mxu0 %v428
        %v547 = vpop.f32.mrb[0].mxu0
        %v548 = vadd.f32 %v413, %v547
        %v549 = vpop.f32.mrb[0].mxu0
        %v550 = vadd.f32 %v417, %v549
        %551 = vmatprep.mubr.f32.mxu0 0.0
        %552 = vmatmul.mubr.f32.gmra.mrb[0].mxu0 %v431
        %v553 = vpop.f32.mrb[0].mxu0
        %v554 = vadd.f32 %v413, %v553
        %v555 = vpop.f32.mrb[0].mxu0
        %v556 = vadd.f32 %v417, %v555
        %557 = vmatprep.mubr.f32.mxu0 0.0
        %558 = vmatmul.mubr.f32.gmra.mrb[0].mxu0 %v434
        %v559 = vpop.f32.mrb[0].mxu0
        %v560 = vadd.f32 %v413, %v559
        %v561 = vpop.f32.mrb[0].mxu0
        %v562 = vadd.f32 %v417, %v561
        %563 = vmatprep.mubr.f32.mxu0 0.0
        %564 = vmatmul.mubr.f32.gmra.mrb[0].mxu0 %v437
        %v565 = vpop.f32.mrb[0].mxu0
        %v566 = vadd.f32 %v413, %v565
        %v567 = vpop.f32.mrb[0].mxu0
        %v568 = vadd.f32 %v417, %v567
        %569 = vmatprep.mubr.f32.mxu0 0.0
        %570 = vmatmul.mubr.f32.gmra.mrb[0].mxu0 %v440
        %v571 = vpop.f32.mrb[0].mxu0
        %v572 = vadd.f32 %v413, %v571
        %v573 = vpop.f32.mrb[0].mxu0
        %v574 = vadd.f32 %v417, %v573
        %575 = vmatprep.mubr.f32.mxu0 0.0
        %576 = vmatmul.mubr.f32.gmra.mrb[0].mxu0 %v443
        %v577 = vpop.f32.mrb[0].mxu0
        %v578 = vadd.f32 %v413, %v577
        %v579 = vpop.f32.mrb[0].mxu0
        %v580 = vadd.f32 %v417, %v579
        %581 = vmatprep.mubr.f32.mxu0 0.0
        %582 = vmatmul.mubr.f32.gmra.mrb[0].mxu0 %v446
        %v583 = vpop.f32.mrb[0].mxu0
        %v584 = vadd.f32 %v413, %v583
        %v585 = vpop.f32.mrb[0].mxu0
        %v586 = vadd.f32 %v417, %v585
        %587 = vmatprep.mubr.f32.mxu0 0.0
        %588 = vmatmul.mubr.f32.gmra.mrb[0].mxu0 %v449
        %v589 = vpop.f32.mrb[0].mxu0
        %v590 = vadd.f32 %v413, %v589
        %v591 = vpop.f32.mrb[0].mxu0
        %v592 = vadd.f32 %v417, %v591
        %593 = vmatprep.mubr.f32.mxu0 0.0
        %594 = vmatmul.mubr.f32.gmra.mrb[0].mxu0 %v452
        %v595 = vpop.f32.mrb[0].mxu0
        %v596 = vadd.f32 %v413, %v595
        %v597 = vpop.f32.mrb[0].mxu0
        %v598 = vadd.f32 %v417, %v597
        %599 = vmatprep.mubr.f32.mxu0 0.0
        %600 = vmatmul.mubr.f32.gmra.mrb[0].mxu0 %v455
        %v601 = vpop.f32.mrb[0].mxu0
        %v602 = vadd.f32 %v413, %v601
        %v603 = vpop.f32.mrb[0].mxu0
        %v604 = vadd.f32 %v417, %v603
        %605 = vmatprep.mubr.f32.mxu0 0.0
        %606 = vmatmul.mubr.f32.gmra.mrb[0].mxu0 %v458
        %v607 = vpop.f32.mrb[0].mxu0
        %v608 = vadd.f32 %v413, %v607
        %v609 = vpop.f32.mrb[0].mxu0
        %v610 = vadd.f32 %v417, %v609
        %611 = vmatprep.mubr.f32.mxu0 0.0
        %612 = vmatmul.mubr.f32.gmra.mrb[0].mxu0 %v461
        %v613 = vpop.f32.mrb[0].mxu0
        %v614 = vadd.f32 %v413, %v613
        %v615 = vpop.f32.mrb[0].mxu0
        %v616 = vadd.f32 %v417, %v615
        %617 = vmatprep.mubr.f32.mxu0 0.0
        %618 = vmatmul.mubr.f32.gmra.mrb[0].mxu0 %v464
        %v619 = vpop.f32.mrb[0].mxu0
        %v620 = vadd.f32 %v413, %v619
        %v621 = vpop.f32.mrb[0].mxu0
        %v622 = vadd.f32 %v417, %v621
        %623 = vmatprep.mubr.f32.mxu0 0.0
        %624 = vmatmul.mubr.f32.gmra.mrb[0].mxu0 %v467
        %v625 = vpop.f32.mrb[0].mxu0
        %v626 = vadd.f32 %v413, %v625
        %v627 = vpop.f32.mrb[0].mxu0
        %v628 = vadd.f32 %v417, %v627
        %629 = vdwg.mxu0
        %v630 = vld [vmem:[#allocation5] sm:$0xff]
        %v631 = vld [vmem:[#allocation5 + $0x8] sm:$0xff]
        %v632 = vld [vmem:[#allocation5 + $0x10] sm:$0xff]
        %v633 = vld [vmem:[#allocation5 + $0x18] sm:$0xff]
        %v634 = vld [vmem:[%s2] sm:$0x1]
        %v636 = vlaneseq
        %v637 = vshrl.u32 %v636, 7
        %v638 = vsub.s32 0, %v637
        %v639 = vrot.slane %v634, %v638
        %v641 = vrot.slane %v385, 7
        %vm642 = vcmask 1041409
        %v643 = vsel %vm642, %v641, %v384
        %v644 = vrot.slane %v386, 6
        %vm645 = vcmask 1042434
        %v646 = vsel %vm645, %v644, %v643
        %v647 = vrot.slane %v387, 5
        %vm648 = vcmask 1043459
        %v649 = vsel %vm648, %v647, %v646
        %v650 = vrot.slane %v388, 4
        %vm651 = vcmask 1044484
        %v652 = vsel %vm651, %v650, %v649
        %v653 = vrot.slane %v389, 3
        %vm654 = vcmask 1045509
        %v655 = vsel %vm654, %v653, %v652
        %v656 = vrot.slane %v390, 2
        %vm657 = vcmask 1046534
        %v658 = vsel %vm657, %v656, %v655
        %v659 = vrot.slane %v391, 1
        %vm660 = vcmask 1047559
        %v661 = vsel %vm660, %v659, %v658
        %v662 = vrot.slane %v393, 7
        %v663 = vsel %vm642, %v662, %v392
        %v664 = vrot.slane %v394, 6
        %v665 = vsel %vm645, %v664, %v663
        %v666 = vrot.slane %v395, 5
        %v667 = vsel %vm648, %v666, %v665
        %v668 = vrot.slane %v396, 4
        %v669 = vsel %vm651, %v668, %v667
        %v670 = vrot.slane %v397, 3
        %v671 = vsel %vm654, %v670, %v669
        %v672 = vrot.slane %v398, 2
        %v673 = vsel %vm657, %v672, %v671
        %v674 = vrot.slane %v399, 1
        %v675 = vsel %vm660, %v674, %v673
        %v676 = vsel %vm420, %v661, 0
        %v678 = vsel %vm420, %v675, 0
        %680 = vmatprep.subr.mxu0 0.0
        %681 = vmatpush1.msra.mxu0 %v630
        %682 = vmatprep.subr.mxu0 0.0
        %683 = vmatpush1.msra.mxu0 %v631
        %684 = vmatprep.subr.mxu0 0.0
        %685 = vmatpush1.msra.mxu0 %v632
        %686 = vmatprep.subr.mxu0 0.0
        %687 = vmatpush1.msra.mxu0 %v633
        %688 = vmatprep.subr.mxu0 0.0
        %689 = vmatpush1.msra.mxu0 0.0
        %690 = vmatprep.subr.mxu0 0.0
        %691 = vmatpush1.msra.mxu0 0.0
        %692 = vmatprep.subr.mxu0 0.0
        %693 = vmatpush1.msra.mxu0 0.0
        %694 = vmatprep.subr.mxu0 0.0
        %695 = vmatpush1.msra.mxu0 0.0
        %696 = vmatprep.subr.mxu0 0.0
        %697 = vmatpush1.msra.mxu0 0.0
        %698 = vmatprep.subr.mxu0 0.0
        %699 = vmatpush1.msra.mxu0 0.0
        %700 = vmatprep.subr.mxu0 0.0
        %701 = vmatpush1.msra.mxu0 0.0
        %702 = vmatprep.subr.mxu0 0.0
        %703 = vmatpush1.msra.mxu0 0.0
        %704 = vmatprep.subr.mxu0 0.0
        %705 = vmatpush1.msra.mxu0 0.0
        %706 = vmatprep.subr.mxu0 0.0
        %707 = vmatpush1.msra.mxu0 0.0
        %708 = vmatprep.subr.mxu0 0.0
        %709 = vmatpush1.msra.mxu0 0.0
        %710 = vmatprep.subr.mxu0 0.0
        %711 = vmatpush1.msra.mxu0 0.0
        %712 = vmatprep.subr.mxu0 0.0
        %713 = vmatpush1.msra.mxu0 0.0
        %714 = vmatprep.subr.mxu0 0.0
        %715 = vmatpush1.msra.mxu0 0.0
        %716 = vmatprep.subr.mxu0 0.0
        %717 = vmatpush1.msra.mxu0 0.0
        %718 = vmatprep.subr.mxu0 0.0
        %719 = vmatpush1.msra.mxu0 0.0
        %720 = vmatprep.subr.mxu0 0.0
        %721 = vmatpush1.msra.mxu0 0.0
        %722 = vmatprep.subr.mxu0 0.0
        %723 = vmatpush1.msra.mxu0 0.0
        %724 = vmatprep.subr.mxu0 0.0
        %725 = vmatpush1.msra.mxu0 0.0
        %726 = vmatprep.subr.mxu0 0.0
        %727 = vmatpush1.msra.mxu0 0.0
        %728 = vmatprep.subr.mxu0 0.0
        %729 = vmatpush1.msra.mxu0 0.0
        %730 = vmatprep.subr.mxu0 0.0
        %731 = vmatpush1.msra.mxu0 0.0
        %732 = vmatprep.subr.mxu0 0.0
        %733 = vmatpush1.msra.mxu0 0.0
        %734 = vmatprep.subr.mxu0 0.0
        %735 = vmatpush1.msra.mxu0 0.0
        %736 = vmatprep.subr.mxu0 0.0
        %737 = vmatpush1.msra.mxu0 0.0
        %738 = vmatprep.subr.mxu0 0.0
        %739 = vmatpush1.msra.mxu0 0.0
        %740 = vmatprep.subr.mxu0 0.0
        %741 = vmatpush1.msra.mxu0 0.0
        %742 = vmatprep.subr.mxu0 0.0
        %743 = vmatpush1.msra.mxu0 0.0
        %744 = vmatprep.mubr.f32.mxu0 0.0
        %745 = vmatmul.mubr.f32.gmra.mrb[0].mxu0 %v676
        %v746 = vpop.f32.mrb[0].mxu0
        %v747 = vadd.f32 %v639, %v746
        %v748 = vpop.f32.mrb[0].mxu0
        %749 = vmatprep.mubr.f32.mxu0 0.0
        %750 = vmatmul.mubr.f32.gmra.mrb[0].mxu0 %v678
        %v751 = vpop.f32.mrb[0].mxu0
        %v752 = vadd.f32 %v639, %v751
        %v753 = vpop.f32.mrb[0].mxu0
        %754 = vdwg.mxu0
        %v757 = vcombine.high %v747, %v747
        %v759 = vunpack.c.l.s4 1966171168
        %v760 = vunpack.c.0.s8 %v759
        %v761 = vlaneseq
        %v762 = vshrl.u32 %v761, 7
        %v763 = vsub.s32 %v760, %v762
        %v764 = vrot.slane %v747, %v763
        %v766 = vunpack.c.l.s4 1966171168
        %v767 = vunpack.c.0.s8 %v766
        %v768 = vlaneseq
        %v769 = vshrl.u32 %v768, 7
        %v770 = vsub.s32 %v767, %v769
        %v771 = vrot.slane %v757, %v770
        %v772 = vcombine.high %v764, %v764
        %v773 = vcombine.high %v771, %v771
        %v775 = vunpack.c.l.s4 1966171168
        %v776 = vunpack.c.0.s8 %v775
        %v777 = vlaneseq
        %v778 = vshrl.u32 %v777, 7
        %v779 = vsub.s32 %v776, %v778
        %v780 = vrot.slane %v764, %v779
        %v782 = vunpack.c.l.s4 1966171168
        %v783 = vunpack.c.0.s8 %v782
        %v784 = vlaneseq
        %v785 = vshrl.u32 %v784, 7
        %v786 = vsub.s32 %v783, %v785
        %v787 = vrot.slane %v771, %v786
        %v789 = vunpack.c.l.s4 1966171168
        %v790 = vunpack.c.0.s8 %v789
        %v791 = vlaneseq
        %v792 = vshrl.u32 %v791, 7
        %v793 = vsub.s32 %v790, %v792
        %v794 = vrot.slane %v772, %v793
        %v796 = vunpack.c.l.s4 1966171168
        %v797 = vunpack.c.0.s8 %v796
        %v798 = vlaneseq
        %v799 = vshrl.u32 %v798, 7
        %v800 = vsub.s32 %v797, %v799
        %v801 = vrot.slane %v773, %v800
        %v802 = vcombine.high %v780, %v780
        %v803 = vcombine.high %v787, %v787
        %v804 = vcombine.high %v794, %v794
        %v805 = vcombine.high %v801, %v801
        %v806 = vcombine.high %v752, %v752
        %v808 = vunpack.c.l.s4 1966171168
        %v809 = vunpack.c.0.s8 %v808
        %v810 = vlaneseq
        %v811 = vshrl.u32 %v810, 7
        %v812 = vsub.s32 %v809, %v811
        %v813 = vrot.slane %v752, %v812
        %v815 = vunpack.c.l.s4 1966171168
        %v816 = vunpack.c.0.s8 %v815
        %v817 = vlaneseq
        %v818 = vshrl.u32 %v817, 7
        %v819 = vsub.s32 %v816, %v818
        %v820 = vrot.slane %v806, %v819
        %v821 = vcombine.high %v813, %v813
        %v822 = vcombine.high %v820, %v820
        %v824 = vunpack.c.l.s4 1966171168
        %v825 = vunpack.c.0.s8 %v824
        %v826 = vlaneseq
        %v827 = vshrl.u32 %v826, 7
        %v828 = vsub.s32 %v825, %v827
        %v829 = vrot.slane %v813, %v828
        %v831 = vunpack.c.l.s4 1966171168
        %v832 = vunpack.c.0.s8 %v831
        %v833 = vlaneseq
        %v834 = vshrl.u32 %v833, 7
        %v835 = vsub.s32 %v832, %v834
        %v836 = vrot.slane %v820, %v835
        %v838 = vunpack.c.l.s4 1966171168
        %v839 = vunpack.c.0.s8 %v838
        %v840 = vlaneseq
        %v841 = vshrl.u32 %v840, 7
        %v842 = vsub.s32 %v839, %v841
        %v843 = vrot.slane %v821, %v842
        %v845 = vunpack.c.l.s4 1966171168
        %v846 = vunpack.c.0.s8 %v845
        %v847 = vlaneseq
        %v848 = vshrl.u32 %v847, 7
        %v849 = vsub.s32 %v846, %v848
        %v850 = vrot.slane %v822, %v849
        %v851 = vcombine.high %v829, %v829
        %v852 = vcombine.high %v836, %v836
        %v853 = vcombine.high %v843, %v843
        %v854 = vcombine.high %v850, %v850
        %v855 = vlaneseq
        %v856 = vshrl.u32 %v855, 7
        %v857 = vsub.s32 0, %v856
        %v858 = vrot.slane %v780, %v857
        %v859 = vlaneseq
        %v860 = vshrl.u32 %v859, 7
        %v861 = vsub.s32 0, %v860
        %v862 = vrot.slane %v794, %v861
        %v863 = vlaneseq
        %v864 = vshrl.u32 %v863, 7
        %v865 = vsub.s32 0, %v864
        %v866 = vrot.slane %v802, %v865
        %v867 = vlaneseq
        %v868 = vshrl.u32 %v867, 7
        %v869 = vsub.s32 0, %v868
        %v870 = vrot.slane %v804, %v869
        %v871 = vlaneseq
        %v872 = vshrl.u32 %v871, 7
        %v873 = vsub.s32 0, %v872
        %v874 = vrot.slane %v787, %v873
        %v875 = vlaneseq
        %v876 = vshrl.u32 %v875, 7
        %v877 = vsub.s32 0, %v876
        %v878 = vrot.slane %v801, %v877
        %v879 = vlaneseq
        %v880 = vshrl.u32 %v879, 7
        %v881 = vsub.s32 0, %v880
        %v882 = vrot.slane %v803, %v881
        %v883 = vlaneseq
        %v884 = vshrl.u32 %v883, 7
        %v885 = vsub.s32 0, %v884
        %v886 = vrot.slane %v805, %v885
        %v887 = vlaneseq
        %v888 = vshrl.u32 %v887, 7
        %v889 = vsub.s32 0, %v888
        %v890 = vrot.slane %v829, %v889
        %v891 = vlaneseq
        %v892 = vshrl.u32 %v891, 7
        %v893 = vsub.s32 0, %v892
        %v894 = vrot.slane %v843, %v893
        %v895 = vlaneseq
        %v896 = vshrl.u32 %v895, 7
        %v897 = vsub.s32 0, %v896
        %v898 = vrot.slane %v851, %v897
        %v899 = vlaneseq
        %v900 = vshrl.u32 %v899, 7
        %v901 = vsub.s32 0, %v900
        %v902 = vrot.slane %v853, %v901
        %v903 = vlaneseq
        %v904 = vshrl.u32 %v903, 7
        %v905 = vsub.s32 0, %v904
        %v906 = vrot.slane %v836, %v905
        %v907 = vlaneseq
        %v908 = vshrl.u32 %v907, 7
        %v909 = vsub.s32 0, %v908
        %v910 = vrot.slane %v850, %v909
        %v911 = vlaneseq
        %v912 = vshrl.u32 %v911, 7
        %v913 = vsub.s32 0, %v912
        %v914 = vrot.slane %v852, %v913
        %v915 = vlaneseq
        %v916 = vshrl.u32 %v915, 7
        %v917 = vsub.s32 0, %v916
        %v918 = vrot.slane %v854, %v917
        %v935 = vmul.f32 %v536, %v858
        %v936 = vmul.f32 %v542, %v862
        %v937 = vmul.f32 %v548, %v866
        %v938 = vmul.f32 %v554, %v870
        %v939 = vmul.f32 %v560, %v874
        %v940 = vmul.f32 %v566, %v878
        %v941 = vmul.f32 %v572, %v882
        %v942 = vmul.f32 %v578, %v886
        %v943 = vmul.f32 %v584, %v890
        %v944 = vmul.f32 %v590, %v894
        %v945 = vmul.f32 %v596, %v898
        %v946 = vmul.f32 %v602, %v902
        %v947 = vmul.f32 %v608, %v906
        %v948 = vmul.f32 %v614, %v910
        %v949 = vmul.f32 %v620, %v914
        %v950 = vmul.f32 %v626, %v918
        %v951 = vld [vmem:[#allocation8] sm:$0xff]
        %v952 = vld [vmem:[#allocation8 + $0x8] sm:$0xff]
        %v953 = vld [vmem:[#allocation8 + $0x10] sm:$0xff]
        %v954 = vld [vmem:[#allocation8 + $0x18] sm:$0xff]
        %v955 = vld [vmem:[#allocation8 + $0x20] sm:$0xff]
        %v956 = vld [vmem:[#allocation8 + $0x28] sm:$0xff]
        %v957 = vld [vmem:[#allocation8 + $0x30] sm:$0xff]
        %v958 = vld [vmem:[#allocation8 + $0x38] sm:$0xff]
        %v959 = vld [vmem:[#allocation8 + $0x40] sm:$0xff]
        %v960 = vld [vmem:[#allocation8 + $0x48] sm:$0xff]
        %v961 = vld [vmem:[#allocation8 + $0x50] sm:$0xff]
        %v962 = vld [vmem:[#allocation8 + $0x58] sm:$0xff]
        %v963 = vld [vmem:[#allocation8 + $0x60] sm:$0xff]
        %v964 = vld [vmem:[#allocation8 + $0x68] sm:$0xff]
        %v965 = vld [vmem:[#allocation8 + $0x70] sm:$0xff]
        %v966 = vld [vmem:[#allocation8 + $0x78] sm:$0xff]
        %967 = vmatprep.subr.mxu0 0.0
        %968 = vmatpush1.msra.mxu0 %v951
        %969 = vmatprep.subr.mxu0 0.0
        %970 = vmatpush1.msra.mxu0 %v952
        %971 = vmatprep.subr.mxu0 0.0
        %972 = vmatpush1.msra.mxu0 %v953
        %973 = vmatprep.subr.mxu0 0.0
        %974 = vmatpush1.msra.mxu0 %v954
        %975 = vmatprep.subr.mxu0 0.0
        %976 = vmatpush1.msra.mxu0 %v955
        %977 = vmatprep.subr.mxu0 0.0
        %978 = vmatpush1.msra.mxu0 %v956
        %979 = vmatprep.subr.mxu0 0.0
        %980 = vmatpush1.msra.mxu0 %v957
        %981 = vmatprep.subr.mxu0 0.0
        %982 = vmatpush1.msra.mxu0 %v958
        %983 = vmatprep.subr.mxu0 0.0
        %984 = vmatpush1.msra.mxu0 %v959
        %985 = vmatprep.subr.mxu0 0.0
        %986 = vmatpush1.msra.mxu0 %v960
        %987 = vmatprep.subr.mxu0 0.0
        %988 = vmatpush1.msra.mxu0 %v961
        %989 = vmatprep.subr.mxu0 0.0
        %990 = vmatpush1.msra.mxu0 %v962
        %991 = vmatprep.subr.mxu0 0.0
        %992 = vmatpush1.msra.mxu0 %v963
        %993 = vmatprep.subr.mxu0 0.0
        %994 = vmatpush1.msra.mxu0 %v964
        %995 = vmatprep.subr.mxu0 0.0
        %996 = vmatpush1.msra.mxu0 %v965
        %997 = vmatprep.subr.mxu0 0.0
        %998 = vmatpush1.msra.mxu0 %v966
        %999 = vmatprep.subr.mxu0 0.0
        %1000 = vmatpush1.msra.mxu0 0.0
        %1001 = vmatprep.subr.mxu0 0.0
        %1002 = vmatpush1.msra.mxu0 0.0
        %1003 = vmatprep.subr.mxu0 0.0
        %1004 = vmatpush1.msra.mxu0 0.0
        %1005 = vmatprep.subr.mxu0 0.0
        %1006 = vmatpush1.msra.mxu0 0.0
        %1007 = vmatprep.subr.mxu0 0.0
        %1008 = vmatpush1.msra.mxu0 0.0
        %1009 = vmatprep.subr.mxu0 0.0
        %1010 = vmatpush1.msra.mxu0 0.0
        %1011 = vmatprep.subr.mxu0 0.0
        %1012 = vmatpush1.msra.mxu0 0.0
        %1013 = vmatprep.subr.mxu0 0.0
        %1014 = vmatpush1.msra.mxu0 0.0
        %1015 = vmatprep.subr.mxu0 0.0
        %1016 = vmatpush1.msra.mxu0 0.0
        %1017 = vmatprep.subr.mxu0 0.0
        %1018 = vmatpush1.msra.mxu0 0.0
        %1019 = vmatprep.subr.mxu0 0.0
        %1020 = vmatpush1.msra.mxu0 0.0
        %1021 = vmatprep.subr.mxu0 0.0
        %1022 = vmatpush1.msra.mxu0 0.0
        %1023 = vmatprep.subr.mxu0 0.0
        %1024 = vmatpush1.msra.mxu0 0.0
        %1025 = vmatprep.subr.mxu0 0.0
        %1026 = vmatpush1.msra.mxu0 0.0
        %1027 = vmatprep.subr.mxu0 0.0
        %1028 = vmatpush1.msra.mxu0 0.0
        %1029 = vmatprep.subr.mxu0 0.0
        %1030 = vmatpush1.msra.mxu0 0.0
        %1031 = vmatprep.mubr.f32.mxu0 0.0
        %1032 = vmatmul.mubr.f32.gmra.mrb[0].mxu0 %v935
        %v1033 = vpop.f32.mrb[0].mxu0
        %v1034 = vadd.f32 0.0, %v1033
        %v1035 = vpop.f32.mrb[0].mxu0
        %1036 = vmatprep.mubr.f32.mxu0 0.0
        %1037 = vmatmul.mubr.f32.gmra.mrb[0].mxu0 %v936
        %v1038 = vpop.f32.mrb[0].mxu0
        %v1039 = vadd.f32 0.0, %v1038
        %v1040 = vpop.f32.mrb[0].mxu0
        %1041 = vmatprep.mubr.f32.mxu0 0.0
        %1042 = vmatmul.mubr.f32.gmra.mrb[0].mxu0 %v937
        %v1043 = vpop.f32.mrb[0].mxu0
        %v1044 = vadd.f32 0.0, %v1043
        %v1045 = vpop.f32.mrb[0].mxu0
        %1046 = vmatprep.mubr.f32.mxu0 0.0
        %1047 = vmatmul.mubr.f32.gmra.mrb[0].mxu0 %v938
        %v1048 = vpop.f32.mrb[0].mxu0
        %v1049 = vadd.f32 0.0, %v1048
        %v1050 = vpop.f32.mrb[0].mxu0
        %1051 = vmatprep.mubr.f32.mxu0 0.0
        %1052 = vmatmul.mubr.f32.gmra.mrb[0].mxu0 %v939
        %v1053 = vpop.f32.mrb[0].mxu0
        %v1054 = vadd.f32 0.0, %v1053
        %v1055 = vpop.f32.mrb[0].mxu0
        %1056 = vmatprep.mubr.f32.mxu0 0.0
        %1057 = vmatmul.mubr.f32.gmra.mrb[0].mxu0 %v940
        %v1058 = vpop.f32.mrb[0].mxu0
        %v1059 = vadd.f32 0.0, %v1058
        %v1060 = vpop.f32.mrb[0].mxu0
        %1061 = vmatprep.mubr.f32.mxu0 0.0
        %1062 = vmatmul.mubr.f32.gmra.mrb[0].mxu0 %v941
        %v1063 = vpop.f32.mrb[0].mxu0
        %v1064 = vadd.f32 0.0, %v1063
        %v1065 = vpop.f32.mrb[0].mxu0
        %1066 = vmatprep.mubr.f32.mxu0 0.0
        %1067 = vmatmul.mubr.f32.gmra.mrb[0].mxu0 %v942
        %v1068 = vpop.f32.mrb[0].mxu0
        %v1069 = vadd.f32 0.0, %v1068
        %v1070 = vpop.f32.mrb[0].mxu0
        %1071 = vmatprep.mubr.f32.mxu0 0.0
        %1072 = vmatmul.mubr.f32.gmra.mrb[0].mxu0 %v943
        %v1073 = vpop.f32.mrb[0].mxu0
        %v1074 = vadd.f32 0.0, %v1073
        %v1075 = vpop.f32.mrb[0].mxu0
        %1076 = vmatprep.mubr.f32.mxu0 0.0
        %1077 = vmatmul.mubr.f32.gmra.mrb[0].mxu0 %v944
        %v1078 = vpop.f32.mrb[0].mxu0
        %v1079 = vadd.f32 0.0, %v1078
        %v1080 = vpop.f32.mrb[0].mxu0
        %1081 = vmatprep.mubr.f32.mxu0 0.0
        %1082 = vmatmul.mubr.f32.gmra.mrb[0].mxu0 %v945
        %v1083 = vpop.f32.mrb[0].mxu0
        %v1084 = vadd.f32 0.0, %v1083
        %v1085 = vpop.f32.mrb[0].mxu0
        %1086 = vmatprep.mubr.f32.mxu0 0.0
        %1087 = vmatmul.mubr.f32.gmra.mrb[0].mxu0 %v946
        %v1088 = vpop.f32.mrb[0].mxu0
        %v1089 = vadd.f32 0.0, %v1088
        %v1090 = vpop.f32.mrb[0].mxu0
        %1091 = vmatprep.mubr.f32.mxu0 0.0
        %1092 = vmatmul.mubr.f32.gmra.mrb[0].mxu0 %v947
        %v1093 = vpop.f32.mrb[0].mxu0
        %v1094 = vadd.f32 0.0, %v1093
        %v1095 = vpop.f32.mrb[0].mxu0
        %1096 = vmatprep.mubr.f32.mxu0 0.0
        %1097 = vmatmul.mubr.f32.gmra.mrb[0].mxu0 %v948
        %v1098 = vpop.f32.mrb[0].mxu0
        %v1099 = vadd.f32 0.0, %v1098
        %v1100 = vpop.f32.mrb[0].mxu0
        %1101 = vmatprep.mubr.f32.mxu0 0.0
        %1102 = vmatmul.mubr.f32.gmra.mrb[0].mxu0 %v949
        %v1103 = vpop.f32.mrb[0].mxu0
        %v1104 = vadd.f32 0.0, %v1103
        %v1105 = vpop.f32.mrb[0].mxu0
        %1106 = vmatprep.mubr.f32.mxu0 0.0
        %1107 = vmatmul.mubr.f32.gmra.mrb[0].mxu0 %v950
        %v1108 = vpop.f32.mrb[0].mxu0
        %v1109 = vadd.f32 0.0, %v1108
        %v1110 = vpop.f32.mrb[0].mxu0
        %1111 = vdwg.mxu0
        %v1112 = vrot.slane %v1034, 4
        %v1113 = vmax.f32 %v1034, %v1112
        %v1114 = vrot.slane %v1113, 2
        %v1115 = vmax.f32 %v1113, %v1114
        %v1116 = vrot.slane %v1115, 1
        %v1117 = vmax.f32 %v1115, %v1116
        %v1118 = vrot.slane %v1039, 4
        %v1119 = vmax.f32 %v1039, %v1118
        %v1120 = vrot.slane %v1119, 2
        %v1121 = vmax.f32 %v1119, %v1120
        %v1122 = vrot.slane %v1121, 1
        %v1123 = vmax.f32 %v1121, %v1122
        %v1124 = vrot.slane %v1044, 4
        %v1125 = vmax.f32 %v1044, %v1124
        %v1126 = vrot.slane %v1125, 2
        %v1127 = vmax.f32 %v1125, %v1126
        %v1128 = vrot.slane %v1127, 1
        %v1129 = vmax.f32 %v1127, %v1128
        %v1130 = vrot.slane %v1049, 4
        %v1131 = vmax.f32 %v1049, %v1130
        %v1132 = vrot.slane %v1131, 2
        %v1133 = vmax.f32 %v1131, %v1132
        %v1134 = vrot.slane %v1133, 1
        %v1135 = vmax.f32 %v1133, %v1134
        %v1136 = vrot.slane %v1054, 4
        %v1137 = vmax.f32 %v1054, %v1136
        %v1138 = vrot.slane %v1137, 2
        %v1139 = vmax.f32 %v1137, %v1138
        %v1140 = vrot.slane %v1139, 1
        %v1141 = vmax.f32 %v1139, %v1140
        %v1142 = vrot.slane %v1059, 4
        %v1143 = vmax.f32 %v1059, %v1142
        %v1144 = vrot.slane %v1143, 2
        %v1145 = vmax.f32 %v1143, %v1144
        %v1146 = vrot.slane %v1145, 1
        %v1147 = vmax.f32 %v1145, %v1146
        %v1148 = vrot.slane %v1064, 4
        %v1149 = vmax.f32 %v1064, %v1148
        %v1150 = vrot.slane %v1149, 2
        %v1151 = vmax.f32 %v1149, %v1150
        %v1152 = vrot.slane %v1151, 1
        %v1153 = vmax.f32 %v1151, %v1152
        %v1154 = vrot.slane %v1069, 4
        %v1155 = vmax.f32 %v1069, %v1154
        %v1156 = vrot.slane %v1155, 2
        %v1157 = vmax.f32 %v1155, %v1156
        %v1158 = vrot.slane %v1157, 1
        %v1159 = vmax.f32 %v1157, %v1158
        %v1160 = vrot.slane %v1074, 4
        %v1161 = vmax.f32 %v1074, %v1160
        %v1162 = vrot.slane %v1161, 2
        %v1163 = vmax.f32 %v1161, %v1162
        %v1164 = vrot.slane %v1163, 1
        %v1165 = vmax.f32 %v1163, %v1164
        %v1166 = vrot.slane %v1079, 4
        %v1167 = vmax.f32 %v1079, %v1166
        %v1168 = vrot.slane %v1167, 2
        %v1169 = vmax.f32 %v1167, %v1168
        %v1170 = vrot.slane %v1169, 1
        %v1171 = vmax.f32 %v1169, %v1170
        %v1172 = vrot.slane %v1084, 4
        %v1173 = vmax.f32 %v1084, %v1172
        %v1174 = vrot.slane %v1173, 2
        %v1175 = vmax.f32 %v1173, %v1174
        %v1176 = vrot.slane %v1175, 1
        %v1177 = vmax.f32 %v1175, %v1176
        %v1178 = vrot.slane %v1089, 4
        %v1179 = vmax.f32 %v1089, %v1178
        %v1180 = vrot.slane %v1179, 2
        %v1181 = vmax.f32 %v1179, %v1180
        %v1182 = vrot.slane %v1181, 1
        %v1183 = vmax.f32 %v1181, %v1182
        %v1184 = vrot.slane %v1094, 4
        %v1185 = vmax.f32 %v1094, %v1184
        %v1186 = vrot.slane %v1185, 2
        %v1187 = vmax.f32 %v1185, %v1186
        %v1188 = vrot.slane %v1187, 1
        %v1189 = vmax.f32 %v1187, %v1188
        %v1190 = vrot.slane %v1099, 4
        %v1191 = vmax.f32 %v1099, %v1190
        %v1192 = vrot.slane %v1191, 2
        %v1193 = vmax.f32 %v1191, %v1192
        %v1194 = vrot.slane %v1193, 1
        %v1195 = vmax.f32 %v1193, %v1194
        %v1196 = vrot.slane %v1104, 4
        %v1197 = vmax.f32 %v1104, %v1196
        %v1198 = vrot.slane %v1197, 2
        %v1199 = vmax.f32 %v1197, %v1198
        %v1200 = vrot.slane %v1199, 1
        %v1201 = vmax.f32 %v1199, %v1200
        %v1202 = vrot.slane %v1109, 4
        %v1203 = vmax.f32 %v1109, %v1202
        %v1204 = vrot.slane %v1203, 2
        %v1205 = vmax.f32 %v1203, %v1204
        %v1206 = vrot.slane %v1205, 1
        %v1207 = vmax.f32 %v1205, %v1206
        %v1208 = vsub.f32 %v1034, %v1117
        %v1209 = vsub.f32 %v1039, %v1123
        %v1210 = vsub.f32 %v1044, %v1129
        %v1211 = vsub.f32 %v1049, %v1135
        %v1212 = vsub.f32 %v1054, %v1141
        %v1213 = vsub.f32 %v1059, %v1147
        %v1214 = vsub.f32 %v1064, %v1153
        %v1215 = vsub.f32 %v1069, %v1159
        %v1216 = vsub.f32 %v1074, %v1165
        %v1217 = vsub.f32 %v1079, %v1171
        %v1218 = vsub.f32 %v1084, %v1177
        %v1219 = vsub.f32 %v1089, %v1183
        %v1220 = vsub.f32 %v1094, %v1189
        %v1221 = vsub.f32 %v1099, %v1195
        %v1222 = vsub.f32 %v1104, %v1201
        %v1223 = vsub.f32 %v1109, %v1207
        %v1224 = vmul.f32 %v1208, 1.442695
        %v1225 = vpow.pop %v1224
        %v1226 = vmul.f32 %v1209, 1.442695
        %v1227 = vpow.pop %v1226
        %v1228 = vmul.f32 %v1210, 1.442695
        %v1229 = vpow.pop %v1228
        %v1230 = vmul.f32 %v1211, 1.442695
        %v1231 = vpow.pop %v1230
        %v1232 = vmul.f32 %v1212, 1.442695
        %v1233 = vpow.pop %v1232
        %v1234 = vmul.f32 %v1213, 1.442695
        %v1235 = vpow.pop %v1234
        %v1236 = vmul.f32 %v1214, 1.442695
        %v1237 = vpow.pop %v1236
        %v1238 = vmul.f32 %v1215, 1.442695
        %v1239 = vpow.pop %v1238
        %v1240 = vmul.f32 %v1216, 1.442695
        %v1241 = vpow.pop %v1240
        %v1242 = vmul.f32 %v1217, 1.442695
        %v1243 = vpow.pop %v1242
        %v1244 = vmul.f32 %v1218, 1.442695
        %v1245 = vpow.pop %v1244
        %v1246 = vmul.f32 %v1219, 1.442695
        %v1247 = vpow.pop %v1246
        %v1248 = vmul.f32 %v1220, 1.442695
        %v1249 = vpow.pop %v1248
        %v1250 = vmul.f32 %v1221, 1.442695
        %v1251 = vpow.pop %v1250
        %v1252 = vmul.f32 %v1222, 1.442695
        %v1253 = vpow.pop %v1252
        %v1254 = vmul.f32 %v1223, 1.442695
        %v1255 = vpow.pop %v1254
        %v1256 = vrot.slane %v1225, 4
        %v1257 = vadd.f32 %v1225, %v1256
        %v1258 = vrot.slane %v1257, 2
        %v1259 = vadd.f32 %v1257, %v1258
        %v1260 = vrot.slane %v1259, 1
        %v1261 = vadd.f32 %v1259, %v1260
        %v1262 = vrot.slane %v1227, 4
        %v1263 = vadd.f32 %v1227, %v1262
        %v1264 = vrot.slane %v1263, 2
        %v1265 = vadd.f32 %v1263, %v1264
        %v1266 = vrot.slane %v1265, 1
        %v1267 = vadd.f32 %v1265, %v1266
        %v1268 = vrot.slane %v1229, 4
        %v1269 = vadd.f32 %v1229, %v1268
        %v1270 = vrot.slane %v1269, 2
        %v1271 = vadd.f32 %v1269, %v1270
        %v1272 = vrot.slane %v1271, 1
        %v1273 = vadd.f32 %v1271, %v1272
        %v1274 = vrot.slane %v1231, 4
        %v1275 = vadd.f32 %v1231, %v1274
        %v1276 = vrot.slane %v1275, 2
        %v1277 = vadd.f32 %v1275, %v1276
        %v1278 = vrot.slane %v1277, 1
        %v1279 = vadd.f32 %v1277, %v1278
        %v1280 = vrot.slane %v1233, 4
        %v1281 = vadd.f32 %v1233, %v1280
        %v1282 = vrot.slane %v1281, 2
        %v1283 = vadd.f32 %v1281, %v1282
        %v1284 = vrot.slane %v1283, 1
        %v1285 = vadd.f32 %v1283, %v1284
        %v1286 = vrot.slane %v1235, 4
        %v1287 = vadd.f32 %v1235, %v1286
        %v1288 = vrot.slane %v1287, 2
        %v1289 = vadd.f32 %v1287, %v1288
        %v1290 = vrot.slane %v1289, 1
        %v1291 = vadd.f32 %v1289, %v1290
        %v1292 = vrot.slane %v1237, 4
        %v1293 = vadd.f32 %v1237, %v1292
        %v1294 = vrot.slane %v1293, 2
        %v1295 = vadd.f32 %v1293, %v1294
        %v1296 = vrot.slane %v1295, 1
        %v1297 = vadd.f32 %v1295, %v1296
        %v1298 = vrot.slane %v1239, 4
        %v1299 = vadd.f32 %v1239, %v1298
        %v1300 = vrot.slane %v1299, 2
        %v1301 = vadd.f32 %v1299, %v1300
        %v1302 = vrot.slane %v1301, 1
        %v1303 = vadd.f32 %v1301, %v1302
        %v1304 = vrot.slane %v1241, 4
        %v1305 = vadd.f32 %v1241, %v1304
        %v1306 = vrot.slane %v1305, 2
        %v1307 = vadd.f32 %v1305, %v1306
        %v1308 = vrot.slane %v1307, 1
        %v1309 = vadd.f32 %v1307, %v1308
        %v1310 = vrot.slane %v1243, 4
        %v1311 = vadd.f32 %v1243, %v1310
        %v1312 = vrot.slane %v1311, 2
        %v1313 = vadd.f32 %v1311, %v1312
        %v1314 = vrot.slane %v1313, 1
        %v1315 = vadd.f32 %v1313, %v1314
        %v1316 = vrot.slane %v1245, 4
        %v1317 = vadd.f32 %v1245, %v1316
        %v1318 = vrot.slane %v1317, 2
        %v1319 = vadd.f32 %v1317, %v1318
        %v1320 = vrot.slane %v1319, 1
        %v1321 = vadd.f32 %v1319, %v1320
        %v1322 = vrot.slane %v1247, 4
        %v1323 = vadd.f32 %v1247, %v1322
        %v1324 = vrot.slane %v1323, 2
        %v1325 = vadd.f32 %v1323, %v1324
        %v1326 = vrot.slane %v1325, 1
        %v1327 = vadd.f32 %v1325, %v1326
        %v1328 = vrot.slane %v1249, 4
        %v1329 = vadd.f32 %v1249, %v1328
        %v1330 = vrot.slane %v1329, 2
        %v1331 = vadd.f32 %v1329, %v1330
        %v1332 = vrot.slane %v1331, 1
        %v1333 = vadd.f32 %v1331, %v1332
        %v1334 = vrot.slane %v1251, 4
        %v1335 = vadd.f32 %v1251, %v1334
        %v1336 = vrot.slane %v1335, 2
        %v1337 = vadd.f32 %v1335, %v1336
        %v1338 = vrot.slane %v1337, 1
        %v1339 = vadd.f32 %v1337, %v1338
        %v1340 = vrot.slane %v1253, 4
        %v1341 = vadd.f32 %v1253, %v1340
        %v1342 = vrot.slane %v1341, 2
        %v1343 = vadd.f32 %v1341, %v1342
        %v1344 = vrot.slane %v1343, 1
        %v1345 = vadd.f32 %v1343, %v1344
        %v1346 = vrot.slane %v1255, 4
        %v1347 = vadd.f32 %v1255, %v1346
        %v1348 = vrot.slane %v1347, 2
        %v1349 = vadd.f32 %v1347, %v1348
        %v1350 = vrot.slane %v1349, 1
        %v1351 = vadd.f32 %v1349, %v1350
        %v1352 = vmul.f32 %v1225, %v538
        %v1353 = vmul.f32 %v1227, %v544
        %v1354 = vmul.f32 %v1229, %v550
        %v1355 = vmul.f32 %v1231, %v556
        %v1356 = vmul.f32 %v1233, %v562
        %v1357 = vmul.f32 %v1235, %v568
        %v1358 = vmul.f32 %v1237, %v574
        %v1359 = vmul.f32 %v1239, %v580
        %v1360 = vmul.f32 %v1241, %v586
        %v1361 = vmul.f32 %v1243, %v592
        %v1362 = vmul.f32 %v1245, %v598
        %v1363 = vmul.f32 %v1247, %v604
        %v1364 = vmul.f32 %v1249, %v610
        %v1365 = vmul.f32 %v1251, %v616
        %v1366 = vmul.f32 %v1253, %v622
        %v1367 = vmul.f32 %v1255, %v628
        %v1368 = vrot.slane %v1352, 4
        %v1369 = vadd.f32 %v1352, %v1368
        %v1370 = vrot.slane %v1369, 2
        %v1371 = vadd.f32 %v1369, %v1370
        %v1372 = vrot.slane %v1371, 1
        %v1373 = vadd.f32 %v1371, %v1372
        %v1374 = vrot.slane %v1353, 4
        %v1375 = vadd.f32 %v1353, %v1374
        %v1376 = vrot.slane %v1375, 2
        %v1377 = vadd.f32 %v1375, %v1376
        %v1378 = vrot.slane %v1377, 1
        %v1379 = vadd.f32 %v1377, %v1378
        %v1380 = vrot.slane %v1354, 4
        %v1381 = vadd.f32 %v1354, %v1380
        %v1382 = vrot.slane %v1381, 2
        %v1383 = vadd.f32 %v1381, %v1382
        %v1384 = vrot.slane %v1383, 1
        %v1385 = vadd.f32 %v1383, %v1384
        %v1386 = vrot.slane %v1355, 4
        %v1387 = vadd.f32 %v1355, %v1386
        %v1388 = vrot.slane %v1387, 2
        %v1389 = vadd.f32 %v1387, %v1388
        %v1390 = vrot.slane %v1389, 1
        %v1391 = vadd.f32 %v1389, %v1390
        %v1392 = vrot.slane %v1356, 4
        %v1393 = vadd.f32 %v1356, %v1392
        %v1394 = vrot.slane %v1393, 2
        %v1395 = vadd.f32 %v1393, %v1394
        %v1396 = vrot.slane %v1395, 1
        %v1397 = vadd.f32 %v1395, %v1396
        %v1398 = vrot.slane %v1357, 4
        %v1399 = vadd.f32 %v1357, %v1398
        %v1400 = vrot.slane %v1399, 2
        %v1401 = vadd.f32 %v1399, %v1400
        %v1402 = vrot.slane %v1401, 1
        %v1403 = vadd.f32 %v1401, %v1402
        %v1404 = vrot.slane %v1358, 4
        %v1405 = vadd.f32 %v1358, %v1404
        %v1406 = vrot.slane %v1405, 2
        %v1407 = vadd.f32 %v1405, %v1406
        %v1408 = vrot.slane %v1407, 1
        %v1409 = vadd.f32 %v1407, %v1408
        %v1410 = vrot.slane %v1359, 4
        %v1411 = vadd.f32 %v1359, %v1410
        %v1412 = vrot.slane %v1411, 2
        %v1413 = vadd.f32 %v1411, %v1412
        %v1414 = vrot.slane %v1413, 1
        %v1415 = vadd.f32 %v1413, %v1414
        %v1416 = vrot.slane %v1360, 4
        %v1417 = vadd.f32 %v1360, %v1416
        %v1418 = vrot.slane %v1417, 2
        %v1419 = vadd.f32 %v1417, %v1418
        %v1420 = vrot.slane %v1419, 1
        %v1421 = vadd.f32 %v1419, %v1420
        %v1422 = vrot.slane %v1361, 4
        %v1423 = vadd.f32 %v1361, %v1422
        %v1424 = vrot.slane %v1423, 2
        %v1425 = vadd.f32 %v1423, %v1424
        %v1426 = vrot.slane %v1425, 1
        %v1427 = vadd.f32 %v1425, %v1426
        %v1428 = vrot.slane %v1362, 4
        %v1429 = vadd.f32 %v1362, %v1428
        %v1430 = vrot.slane %v1429, 2
        %v1431 = vadd.f32 %v1429, %v1430
        %v1432 = vrot.slane %v1431, 1
        %v1433 = vadd.f32 %v1431, %v1432
        %v1434 = vrot.slane %v1363, 4
        %v1435 = vadd.f32 %v1363, %v1434
        %v1436 = vrot.slane %v1435, 2
        %v1437 = vadd.f32 %v1435, %v1436
        %v1438 = vrot.slane %v1437, 1
        %v1439 = vadd.f32 %v1437, %v1438
        %v1440 = vrot.slane %v1364, 4
        %v1441 = vadd.f32 %v1364, %v1440
        %v1442 = vrot.slane %v1441, 2
        %v1443 = vadd.f32 %v1441, %v1442
        %v1444 = vrot.slane %v1443, 1
        %v1445 = vadd.f32 %v1443, %v1444
        %v1446 = vrot.slane %v1365, 4
        %v1447 = vadd.f32 %v1365, %v1446
        %v1448 = vrot.slane %v1447, 2
        %v1449 = vadd.f32 %v1447, %v1448
        %v1450 = vrot.slane %v1449, 1
        %v1451 = vadd.f32 %v1449, %v1450
        %v1452 = vrot.slane %v1366, 4
        %v1453 = vadd.f32 %v1366, %v1452
        %v1454 = vrot.slane %v1453, 2
        %v1455 = vadd.f32 %v1453, %v1454
        %v1456 = vrot.slane %v1455, 1
        %v1457 = vadd.f32 %v1455, %v1456
        %v1458 = vrot.slane %v1367, 4
        %v1459 = vadd.f32 %v1367, %v1458
        %v1460 = vrot.slane %v1459, 2
        %v1461 = vadd.f32 %v1459, %v1460
        %v1462 = vrot.slane %v1461, 1
        %v1463 = vadd.f32 %v1461, %v1462
        %v1464 = vrcp.pop %v1261
        %v1465 = vmul.f32 1.0, %v1464
        %v1466 = vrcp.pop %v1267
        %v1467 = vmul.f32 1.0, %v1466
        %v1468 = vrcp.pop %v1273
        %v1469 = vmul.f32 1.0, %v1468
        %v1470 = vrcp.pop %v1279
        %v1471 = vmul.f32 1.0, %v1470
        %v1472 = vrcp.pop %v1285
        %v1473 = vmul.f32 1.0, %v1472
        %v1474 = vrcp.pop %v1291
        %v1475 = vmul.f32 1.0, %v1474
        %v1476 = vrcp.pop %v1297
        %v1477 = vmul.f32 1.0, %v1476
        %v1478 = vrcp.pop %v1303
        %v1479 = vmul.f32 1.0, %v1478
        %v1480 = vrcp.pop %v1309
        %v1481 = vmul.f32 1.0, %v1480
        %v1482 = vrcp.pop %v1315
        %v1483 = vmul.f32 1.0, %v1482
        %v1484 = vrcp.pop %v1321
        %v1485 = vmul.f32 1.0, %v1484
        %v1486 = vrcp.pop %v1327
        %v1487 = vmul.f32 1.0, %v1486
        %v1488 = vrcp.pop %v1333
        %v1489 = vmul.f32 1.0, %v1488
        %v1490 = vrcp.pop %v1339
        %v1491 = vmul.f32 1.0, %v1490
        %v1492 = vrcp.pop %v1345
        %v1493 = vmul.f32 1.0, %v1492
        %v1494 = vrcp.pop %v1351
        %v1495 = vmul.f32 1.0, %v1494
        %v1496 = vmul.f32 %v1373, %v1465
        %v1497 = vmul.f32 %v1379, %v1467
        %v1498 = vmul.f32 %v1385, %v1469
        %v1499 = vmul.f32 %v1391, %v1471
        %v1500 = vmul.f32 %v1397, %v1473
        %v1501 = vmul.f32 %v1403, %v1475
        %v1502 = vmul.f32 %v1409, %v1477
        %v1503 = vmul.f32 %v1415, %v1479
        %v1504 = vmul.f32 %v1421, %v1481
        %v1505 = vmul.f32 %v1427, %v1483
        %v1506 = vmul.f32 %v1433, %v1485
        %v1507 = vmul.f32 %v1439, %v1487
        %v1508 = vmul.f32 %v1445, %v1489
        %v1509 = vmul.f32 %v1451, %v1491
        %v1510 = vmul.f32 %v1457, %v1493
        %v1511 = vmul.f32 %v1463, %v1495
        %v1512 = vld [vmem:[#allocation10] sm:$0xff]
        %v1513 = vld [vmem:[#allocation10 + $0x8] sm:$0xff]
        %v1514 = vld [vmem:[#allocation10 + $0x10] sm:$0xff]
        %v1515 = vld [vmem:[#allocation10 + $0x18] sm:$0xff]
        %v1516 = vld [vmem:[#allocation10 + $0x20] sm:$0xff]
        %v1517 = vld [vmem:[#allocation10 + $0x28] sm:$0xff]
        %v1518 = vld [vmem:[#allocation10 + $0x30] sm:$0xff]
        %v1519 = vld [vmem:[#allocation10 + $0x38] sm:$0xff]
        %v1520 = vld [vmem:[#allocation10 + $0x40] sm:$0xff]
        %v1521 = vld [vmem:[#allocation10 + $0x48] sm:$0xff]
        %v1522 = vld [vmem:[#allocation10 + $0x50] sm:$0xff]
        %v1523 = vld [vmem:[#allocation10 + $0x58] sm:$0xff]
        %v1524 = vld [vmem:[#allocation10 + $0x60] sm:$0xff]
        %v1525 = vld [vmem:[#allocation10 + $0x68] sm:$0xff]
        %v1526 = vld [vmem:[#allocation10 + $0x70] sm:$0xff]
        %v1527 = vld [vmem:[#allocation10 + $0x78] sm:$0xff]
        %v1528 = vld [vmem:[%s7] sm:$0x1]
        %v1530 = vlaneseq
        %v1531 = vshrl.u32 %v1530, 7
        %v1532 = vsub.s32 0, %v1531
        %v1533 = vrot.slane %v1528, %v1532
        %v1551 = vsel %vm642, %v1497, %v1496
        %v1552 = vsel %vm645, %v1498, %v1551
        %v1553 = vsel %vm648, %v1499, %v1552
        %v1554 = vsel %vm651, %v1500, %v1553
        %v1555 = vsel %vm654, %v1501, %v1554
        %v1556 = vsel %vm657, %v1502, %v1555
        %v1557 = vsel %vm660, %v1503, %v1556
        %v1558 = vsel %vm642, %v1505, %v1504
        %v1559 = vsel %vm645, %v1506, %v1558
        %v1560 = vsel %vm648, %v1507, %v1559
        %v1561 = vsel %vm651, %v1508, %v1560
        %v1562 = vsel %vm654, %v1509, %v1561
        %v1563 = vsel %vm657, %v1510, %v1562
        %v1564 = vsel %vm660, %v1511, %v1563
        %1567 = vmatprep.subr.mxu0 0.0
        %1568 = vmatpush1.msra.mxu0 %v1512
        %1569 = vmatprep.subr.mxu0 0.0
        %1570 = vmatpush1.msra.mxu0 %v1513
        %1571 = vmatprep.subr.mxu0 0.0
        %1572 = vmatpush1.msra.mxu0 %v1514
        %1573 = vmatprep.subr.mxu0 0.0
        %1574 = vmatpush1.msra.mxu0 %v1515
        %1575 = vmatprep.subr.mxu0 0.0
        %1576 = vmatpush1.msra.mxu0 %v1516
        %1577 = vmatprep.subr.mxu0 0.0
        %1578 = vmatpush1.msra.mxu0 %v1517
        %1579 = vmatprep.subr.mxu0 0.0
        %1580 = vmatpush1.msra.mxu0 %v1518
        %1581 = vmatprep.subr.mxu0 0.0
        %1582 = vmatpush1.msra.mxu0 %v1519
        %1583 = vmatprep.subr.mxu0 0.0
        %1584 = vmatpush1.msra.mxu0 %v1520
        %1585 = vmatprep.subr.mxu0 0.0
        %1586 = vmatpush1.msra.mxu0 %v1521
        %1587 = vmatprep.subr.mxu0 0.0
        %1588 = vmatpush1.msra.mxu0 %v1522
        %1589 = vmatprep.subr.mxu0 0.0
        %1590 = vmatpush1.msra.mxu0 %v1523
        %1591 = vmatprep.subr.mxu0 0.0
        %1592 = vmatpush1.msra.mxu0 %v1524
        %1593 = vmatprep.subr.mxu0 0.0
        %1594 = vmatpush1.msra.mxu0 %v1525
        %1595 = vmatprep.subr.mxu0 0.0
        %1596 = vmatpush1.msra.mxu0 %v1526
        %1597 = vmatprep.subr.mxu0 0.0
        %1598 = vmatpush1.msra.mxu0 %v1527
        %1599 = vmatprep.subr.mxu0 0.0
        %1600 = vmatpush1.msra.mxu0 0.0
        %1601 = vmatprep.subr.mxu0 0.0
        %1602 = vmatpush1.msra.mxu0 0.0
        %1603 = vmatprep.subr.mxu0 0.0
        %1604 = vmatpush1.msra.mxu0 0.0
        %1605 = vmatprep.subr.mxu0 0.0
        %1606 = vmatpush1.msra.mxu0 0.0
        %1607 = vmatprep.subr.mxu0 0.0
        %1608 = vmatpush1.msra.mxu0 0.0
        %1609 = vmatprep.subr.mxu0 0.0
        %1610 = vmatpush1.msra.mxu0 0.0
        %1611 = vmatprep.subr.mxu0 0.0
        %1612 = vmatpush1.msra.mxu0 0.0
        %1613 = vmatprep.subr.mxu0 0.0
        %1614 = vmatpush1.msra.mxu0 0.0
        %1615 = vmatprep.subr.mxu0 0.0
        %1616 = vmatpush1.msra.mxu0 0.0
        %1617 = vmatprep.subr.mxu0 0.0
        %1618 = vmatpush1.msra.mxu0 0.0
        %1619 = vmatprep.subr.mxu0 0.0
        %1620 = vmatpush1.msra.mxu0 0.0
        %1621 = vmatprep.subr.mxu0 0.0
        %1622 = vmatpush1.msra.mxu0 0.0
        %1623 = vmatprep.subr.mxu0 0.0
        %1624 = vmatpush1.msra.mxu0 0.0
        %1625 = vmatprep.subr.mxu0 0.0
        %1626 = vmatpush1.msra.mxu0 0.0
        %1627 = vmatprep.subr.mxu0 0.0
        %1628 = vmatpush1.msra.mxu0 0.0
        %1629 = vmatprep.subr.mxu0 0.0
        %1630 = vmatpush1.msra.mxu0 0.0
        %1631 = vmatprep.mubr.f32.mxu0 0.0
        %1632 = vmatmul.mubr.f32.gmra.mrb[0].mxu0 %v1557
        %v1633 = vpop.f32.mrb[0].mxu0
        %v1634 = vadd.f32 %v1533, %v1633
        %v1635 = vpop.f32.mrb[0].mxu0
        %1636 = vmatprep.mubr.f32.mxu0 0.0
        %1637 = vmatmul.mubr.f32.gmra.mrb[0].mxu0 %v1564
        %v1638 = vpop.f32.mrb[0].mxu0
        %v1639 = vadd.f32 %v1533, %v1638
        %v1640 = vpop.f32.mrb[0].mxu0
        %1641 = vdwg.mxu0
        %v1642 = vmax.f32 %v1634, 0.0
        %v1643 = vmax.f32 %v1639, 0.0
        %1644 = vst [vmem:[%s381] sm:$0xff] %v1642
        %1645 = vst [vmem:[%s381 + $0x8] sm:$0xff] %v1643
        %s1646 = sand.u32 %s208, 1
        %s1647 = scalar_lea.sflag [#allocation4], %s1646
        %s1648 = sand.u32 %s208, 1
        %s1649 = smul.addr %s1648, 16
        %s1650 = scalar_lea.vmem [#allocation11], %s1649
        // Predicated region
        $region73: #{tpu_custom_call.1} parent=51 // pred_check
          %p1651 = pneg %p218
        $region74: #{tpu_custom_call.1} parent=51 // pred_check_branch
          %1653 = sbr.rel (%p1651) target = $region76
        $region75: #{tpu_custom_call.1} parent=51 // pred_region
          %s1654 = smul.u32 2, %s27
          %s1656 = ssub.s32 256, 256
          %1657 = vsyncadd %s1647, %s1656
          %s1658 = smul.addr %s1654, 128
          %s1659 = scalar_lea.hbm %s8, %s1658
          %s1660 = sshll.u32 %s1650, 4
          %s1661 = int_to_ptr.vmem [resolvable:$true] %s1660
          %1666 = dma.vmem_to_hbm [thread:$0]  %s1661, 256, %s1659, %s1647, 128, 128, 8
        $region76: #{tpu_custom_call.1} parent=51 // pred_fallthru
          _
      $region52: #{tpu_custom_call.1} parent=5 // pred_fallthru
        _
      %p1667 = scmp.le.s32.totalorder 2, %s22
      // Predicated region
      $region77: #{tpu_custom_call.1} parent=5 // pred_check
        %p1668 = pneg %p1667
      $region78: #{tpu_custom_call.1} parent=5 // pred_check_branch
        %1670 = sbr.rel (%p1668) target = $region80
      $region79: #{tpu_custom_call.1} parent=5 // pred_region
        %s1671 = ssub.s32 %s22, 2
        // Predicated region
        $region81: #{tpu_custom_call.1} parent=79 // pred_check
          %p1672 = pneg %p224
        $region82: #{tpu_custom_call.1} parent=79 // pred_check_branch
          %1674 = sbr.rel (%p1672) target = $region84
        $region83: #{tpu_custom_call.1} parent=79 // pred_region
          %s1675 = sand.u32 %s209, 1
          %s1676 = scalar_lea.sflag [#allocation4], %s1675
          %s1677 = sand.u32 %s209, 1
          %s1678 = smul.addr %s1677, 16
          %s1679 = scalar_lea.vmem [#allocation11], %s1678
          %1680 = dma.done %s1676, 256
        $region84: #{tpu_custom_call.1} parent=79 // pred_fallthru
          _
      $region80: #{tpu_custom_call.1} parent=5 // pred_fallthru
        _
    $region6: #{tpu_custom_call.1} parent=1 // loop_footer
      %s26 = sadd.s32 1, %s22
    $region7: #{tpu_custom_call.1} parent=1 // loop_footer_branch
      %21 = sbr.rel target = $region3
    $region8: #{tpu_custom_call.1} parent=1 // loop_exit
      _
    %1681 = vsyncpa [#allocation3], 1
    %s1682 = scalar_lea.sflag [#allocation3], 1
    %1683 = vsyncpa %s1682, 1
    %1684 = vsyncpa [#allocation6], 1
    %1685 = vsyncpa [#allocation9], 1
    %1686 = vsyncpa [#allocation4], 1
    %s1687 = scalar_lea.sflag [#allocation4], 1
    %1688 = vsyncpa %s1687, 1

</llo_original>
